<compile_context>
chip_gen: v7x
topology: tpu7x:2x2x1
jax: 0.10.0
libtpu: 0.0.40
codegen_flags: <defaults>
</compile_context>

<pallas_src>
import functools

import jax
import jax.numpy as jnp
import numpy as np
from jax import lax
from jax.experimental import pallas as pl
from jax.experimental.pallas import tpu as pltpu


KSIZE = 7  # spatial-attention conv kernel size (padding = KSIZE // 2)


def _tpu_vmem_capacity_bytes():
    """Trace-time VMEM capacity query; falls back to the v7x 64 MiB floor."""
    try:
        info = pltpu.get_tpu_info()
        cap = getattr(info, "vmem_capacity_bytes", None)
        if cap:
            return int(cap)
    except Exception:
        pass
    return 64 * 1024 * 1024


def _cbam_kernel(x_ref, w1_ref, w2_ref, cw_ref, o_ref, *, H, W):
    """Processes Bt batch elements per grid step.

    x_ref : (Bt, C, H*W) VMEM   input activations (NCHW, HW flattened -> lane-dense)
    w1_ref: (C, C//r)    VMEM   first FC weight (applied as v @ w1)
    w2_ref: (C//r, C)    VMEM   second FC weight
    cw_ref: (2*K*K,)     SMEM   spatial conv weights, flattened [c_in(avg,max), ki, kj]
    o_ref : (Bt, C, H*W) VMEM   output
    """
    Bt, C, HW = x_ref.shape
    xf = x_ref[...].astype(jnp.float32)              # (Bt, C, HW); no-op for f32 input

    # ---------------- channel attention ----------------
    mx = jnp.max(xf, axis=-1)                        # (Bt, C)
    av = jnp.sum(xf, axis=-1) * (1.0 / HW)           # (Bt, C)
    # Fused FC over stacked [max; avg] rows: one matmul pair instead of two.
    pooled = jnp.concatenate([mx, av], axis=0)       # (2*Bt, C)
    hid = jnp.maximum(
        jnp.dot(pooled, w1_ref[...], preferred_element_type=jnp.float32), 0.0)
    z = jnp.dot(hid, w2_ref[...], preferred_element_type=jnp.float32)  # (2*Bt, C)
    ca = jax.nn.sigmoid(z[:Bt, :] + z[Bt:, :])       # (Bt, C)
    y = xf * ca[:, :, None]                          # (Bt, C, HW); xf dead after this

    # ---------------- spatial attention ----------------
    max_c = jnp.max(y, axis=1)                       # (Bt, HW)  channel max
    avg_c = jnp.sum(y, axis=1) * (1.0 / C)           # (Bt, HW)  channel mean

    P = KSIZE // 2
    KK = KSIZE * KSIZE

    # Flat position index p (2-D iota) and column coordinate.  Row masks need no
    # division at all: row(p) < k  <=>  p < k*W.  Column needs a single int mod
    # on a (1, HW) array per grid step.
    pidx = lax.broadcasted_iota(jnp.int32, (1, HW), 1)   # (1, HW)
    col = pidx % W                                        # (1, HW)

    # Hoisted scalar conv weights from SMEM ([avg, max] input-channel order).
    w_avg = [cw_ref[k] for k in range(KK)]
    w_max = [cw_ref[KK + k] for k in range(KK)]

    conv = jnp.zeros((Bt, HW), jnp.float32)
    # Outer loop over column offset dj: one lane-roll + one column-mask select per
    # pooled map, shared by all 7 row offsets.  Inner loop over di: scalar weights
    # folded in BEFORE the roll (roll is linear), so each tap is a single XLU roll
    # by di*W (pure sublane rotate whenever W % 128 == 0) plus one row-mask select.
    for dj in range(-P, P + 1):
        sj = (-dj) % HW
        aj = pltpu.roll(avg_c, sj, axis=1) if sj else avg_c
        mj = pltpu.roll(max_c, sj, axis=1) if sj else max_c
        if dj > 0:
            cm = col < (W - dj)
            aj = jnp.where(cm, aj, 0.0)
            mj = jnp.where(cm, mj, 0.0)
        elif dj < 0:
            cm = col >= (-dj)
            aj = jnp.where(cm, aj, 0.0)
            mj = jnp.where(cm, mj, 0.0)
        for di in range(-P, P + 1):
            k = (di + P) * KSIZE + (dj + P)
            term = w_avg[k] * aj + w_max[k] * mj     # combine before the roll
            si = (-(di * W)) % HW
            if si:
                term = pltpu.roll(term, si, axis=1)
            if di > 0:
                term = jnp.where(pidx < (H - di) * W, term, 0.0)
            elif di < 0:
                term = jnp.where(pidx >= (-di) * W, term, 0.0)
            conv = conv + term

    sa = jax.nn.sigmoid(conv)                        # (Bt, HW)
    o_ref[...] = (y * sa[:, None, :]).astype(o_ref.dtype)


@jax.jit
def cbam_pallas(x_nchw, w1, w2, conv_w_flat):
    """x_nchw: (B, C, H, W). Returns (B, C, H, W). No HBM transposes."""
    B, C, H, W = x_nchw.shape
    HW = H * W
    CR = w1.shape[1]

    # Free contiguous reshape; channel ordering / semantics stay NCHW.
    x_flat = x_nchw.reshape(B, C, HW)

    elem_bytes = C * HW * x_nchw.dtype.itemsize
    f32_elem_bytes = C * HW * 4

    # Generation-aware budgets.
    vmem_cap = _tpu_vmem_capacity_bytes()
    if vmem_cap >= (112 << 20):        # v5e / v6e: 128 MiB VMEM parts
        target_block = 8 << 20
        budget = 96 << 20
    else:                              # v7x: 64 MiB per-core VMEM
        target_block = 4 << 20
        budget = min(48 << 20, (vmem_cap * 3) // 4)

    def footprint(bt):
        # 2x double-buffered input + 2x double-buffered output
        # + ~3 block-equivalents of f32 intermediates (y, pooled maps, conv acc)
        # + small fixed slack (weights, masks, iotas).
        return 4 * bt * elem_bytes + 3 * bt * f32_elem_bytes + (2 << 20)

    # Largest batch tile that (a) keeps >= 2 grid steps so both v7x TCs get work
    # and the pipeline overlaps, (b) stays under the block target, (c) fits VMEM.
    bt_cap = max(1, B // 2)
    Bt = 1
    for d in range(1, bt_cap + 1):
        if B % d == 0 and d * elem_bytes <= target_block and footprint(d) <= budget:
            Bt = d

    vmem_limit = int(min(budget, max(24 << 20, footprint(Bt))))

    # TODO(synk): add an H-tiled (3-row-halo) two-pass path for shapes where one
    # batch element already overflows the VMEM budget (esp. v7x 64 MiB), and a
    # lane-padding path when H*W is not a multiple of 128 (e.g. 14x14 maps).

    out_flat = pl.pallas_call(
        functools.partial(_cbam_kernel, H=H, W=W),
        out_shape=jax.ShapeDtypeStruct((B, C, HW), x_nchw.dtype),
        grid_spec=pltpu.PrefetchScalarGridSpec(
            num_scalar_prefetch=0,
            grid=(B // Bt,),
            in_specs=[
                pl.BlockSpec((Bt, C, HW), lambda b: (b, 0, 0)),
                pl.BlockSpec((C, CR), lambda b: (0, 0)),
                pl.BlockSpec((CR, C), lambda b: (0, 0)),
                pl.BlockSpec(memory_space=pltpu.MemorySpace.SMEM),
            ],
            out_specs=pl.BlockSpec((Bt, C, HW), lambda b: (b, 0, 0)),
        ),
        compiler_params=pltpu.CompilerParams(
            dimension_semantics=("parallel",),
            vmem_limit_bytes=vmem_limit,
        ),
    )(x_flat, w1, w2, conv_w_flat)

    return out_flat.reshape(B, C, H, W)


def cbam_reference(x, w1, w2, conv_w):
    """Pure-JAX reference matching the PyTorch CBAM forward (NCHW)."""
    # channel attention
    mx = jnp.max(x, axis=(2, 3))          # (B, C)
    av = jnp.mean(x, axis=(2, 3))         # (B, C)

    def fc(v):
        return jnp.maximum(v @ w1, 0.0) @ w2

    scale = jax.nn.sigmoid(fc(mx) + fc(av))            # (B, C)
    y = x * scale[:, :, None, None]

    # spatial attention
    max_c = jnp.max(y, axis=1, keepdims=True)           # (B, 1, H, W)
    avg_c = jnp.mean(y, axis=1, keepdims=True)
    pool = jnp.concatenate([avg_c, max_c], axis=1)       # (B, 2, H, W)
    conv = lax.conv_general_dilated(
        pool, conv_w, window_strides=(1, 1),
        padding=[(KSIZE // 2, KSIZE // 2)] * 2,
        dimension_numbers=("NCHW", "OIHW", "NCHW"))
    att = jax.nn.sigmoid(conv)                           # (B, 1, H, W)
    return y * att


if __name__ == "__main__":
    # Small shapes consistent with the module: channel must be >= ratio (16).
    B, C, H, W = 2, 32, 16, 16
    RATIO = 16
    CR = C // RATIO

    key = jax.random.PRNGKey(0)
    kx, k1, k2, k3 = jax.random.split(key, 4)

    x = jax.random.normal(kx, (B, C, H, W), dtype=jnp.float32)
    # nn.Linear(C, C//r, bias=False) applied as v @ w1 (w1 = weight.T), etc.
    w1 = jax.random.normal(k1, (C, CR), dtype=jnp.float32) * 0.1
    w2 = jax.random.normal(k2, (CR, C), dtype=jnp.float32) * 0.1
    # nn.Conv2d(2, 1, 7, padding=3, bias=False) weight, OIHW = (1, 2, 7, 7)
    conv_w = jax.random.normal(k3, (1, 2, KSIZE, KSIZE), dtype=jnp.float32) * 0.1
    conv_w_flat = conv_w[0].reshape(-1)                  # (2*7*7,) order [c_in, ki, kj]

    out = jax.block_until_ready(cbam_pallas(x, w1, w2, conv_w_flat))
    ref = jax.block_until_ready(cbam_reference(x, w1, w2, conv_w))

    assert out.shape == (B, C, H, W)
    assert np.allclose(np.asarray(out), np.asarray(ref), atol=5e-4, rtol=5e-4), \
        "Pallas CBAM output mismatch vs reference"

    print("KERNEL_OK")
</pallas_src>

<mosaic_0001>
module attributes {stable_mosaic.version = 11 : i64} {
  func.func @_cbam_kernel(%arg0: i32, %arg1: memref<1x32x256xf32, #tpu.memory_space<vmem>>, %arg2: memref<32x2xf32, #tpu.memory_space<vmem>>, %arg3: memref<2x32xf32, #tpu.memory_space<vmem>>, %arg4: memref<98xf32, #tpu.memory_space<smem>>, %arg5: memref<1x32x256xf32, #tpu.memory_space<vmem>>) attributes {dimension_semantics = [#tpu.dimension_semantics<parallel>], iteration_bounds = array<i64: 2>, scalar_prefetch = 0 : i64, scratch_operands = 0 : i64, tpu.core_type = #tpu.core_type<tc>, window_params = [{transform_indices = @transform_0, window_bounds = array<i64: 1, 32, 256>}, {pipeline_mode = #tpu.pipeline_mode<synchronous>, transform_indices = @transform_1, window_bounds = array<i64: 32, 2>}, {pipeline_mode = #tpu.pipeline_mode<synchronous>, transform_indices = @transform_2, window_bounds = array<i64: 2, 32>}, {transform_indices = @transform_3, window_bounds = array<i64: 98>}, {transform_indices = @transform_4, window_bounds = array<i64: 1, 32, 256>}]} {
    %c0 = arith.constant 0 : index
    %c0_0 = arith.constant 0 : index
    %c0_1 = arith.constant 0 : index
    %0 = vector.load %arg1[%c0, %c0_0, %c0_1] : memref<1x32x256xf32, #tpu.memory_space<vmem>>, vector<1x32x256xf32>
    %cst = arith.constant dense<0xFF800000> : vector<1x32xf32>
    %1 = vector.multi_reduction <maximumf>, %0, %cst [2] : vector<1x32x256xf32> to vector<1x32xf32>
    %cst_2 = arith.constant dense<0.000000e+00> : vector<1x32xf32>
    %2 = vector.multi_reduction <add>, %0, %cst_2 [2] : vector<1x32x256xf32> to vector<1x32xf32>
    %cst_3 = arith.constant 3.906250e-03 : f32
    %3 = vector.broadcast %cst_3 : f32 to vector<1x32xf32>
    %4 = arith.mulf %2, %3 : vector<1x32xf32>
    %5 = tpu.concatenate %1, %4 in 0 : vector<1x32xf32>, vector<1x32xf32> -> vector<2x32xf32>
    %c0_4 = arith.constant 0 : index
    %c0_5 = arith.constant 0 : index
    %6 = vector.load %arg2[%c0_4, %c0_5] : memref<32x2xf32, #tpu.memory_space<vmem>>, vector<32x2xf32>
    %cst_6 = arith.constant dense<0.000000e+00> : vector<2x2xf32>
    %7 = tpu.matmul %5, %6, %cst_6 {dimension_numbers = #tpu.dot_dimension_numbers<[1], [0], [0], [1], [0, 0, 1, 1], [], []>} : vector<2x32xf32>, vector<32x2xf32>, vector<2x2xf32> -> vector<2x2xf32>
    %cst_7 = arith.constant 0.000000e+00 : f32
    %8 = vector.broadcast %cst_7 : f32 to vector<2x2xf32>
    %9 = arith.maximumf %7, %8 : vector<2x2xf32>
    %c0_8 = arith.constant 0 : index
    %c0_9 = arith.constant 0 : index
    %10 = vector.load %arg3[%c0_8, %c0_9] : memref<2x32xf32, #tpu.memory_space<vmem>>, vector<2x32xf32>
    %cst_10 = arith.constant dense<0.000000e+00> : vector<2x32xf32>
    %11 = tpu.matmul %9, %10, %cst_10 {dimension_numbers = #tpu.dot_dimension_numbers<[1], [0], [0], [1], [0, 0, 1, 1], [], []>} : vector<2x2xf32>, vector<2x32xf32>, vector<2x32xf32> -> vector<2x32xf32>
    %12 = vector.extract_strided_slice %11 {offsets = [0, 0], sizes = [1, 32], strides = [1, 1]} : vector<2x32xf32> to vector<1x32xf32>
    %13 = vector.extract_strided_slice %11 {offsets = [1, 0], sizes = [1, 32], strides = [1, 1]} : vector<2x32xf32> to vector<1x32xf32>
    %14 = arith.addf %12, %13 : vector<1x32xf32>
    %15 = arith.negf %14 : vector<1x32xf32>
    %16 = math.exp %15 : vector<1x32xf32>
    %cst_11 = arith.constant 1.000000e+00 : f32
    %17 = vector.broadcast %cst_11 : f32 to vector<1x32xf32>
    %18 = arith.addf %17, %16 : vector<1x32xf32>
    %19 = arith.divf %17, %18 : vector<1x32xf32>
    %20 = vector.shape_cast %19 : vector<1x32xf32> to vector<1x32x1xf32>
    %21 = vector.broadcast %20 : vector<1x32x1xf32> to vector<1x32x256xf32>
    %22 = arith.mulf %0, %21 : vector<1x32x256xf32>
    %cst_12 = arith.constant dense<0xFF800000> : vector<1x256xf32>
    %23 = vector.multi_reduction <maximumf>, %22, %cst_12 [1] : vector<1x32x256xf32> to vector<1x256xf32>
    %cst_13 = arith.constant dense<0.000000e+00> : vector<1x256xf32>
    %24 = vector.multi_reduction <add>, %22, %cst_13 [1] : vector<1x32x256xf32> to vector<1x256xf32>
    %cst_14 = arith.constant 3.125000e-02 : f32
    %25 = vector.broadcast %cst_14 : f32 to vector<1x256xf32>
    %26 = arith.mulf %24, %25 : vector<1x256xf32>
    %27 = tpu.iota {dimensions = array<i32: 1>} : vector<1x256xi32>
    %c16_i32 = arith.constant 16 : i32
    %c0_i32 = arith.constant 0 : i32
    %28 = arith.cmpi eq, %c16_i32, %c0_i32 : i32
    %c1_i32 = arith.constant 1 : i32
    %29 = arith.select %28, %c1_i32, %c16_i32 : i32
    %30 = vector.broadcast %29 : i32 to vector<1x256xi32>
    %31 = arith.remsi %27, %30 : vector<1x256xi32>
    %c0_i32_15 = arith.constant 0 : i32
    %32 = vector.broadcast %c0_i32_15 : i32 to vector<1x256xi32>
    %33 = arith.cmpi ne, %31, %32 : vector<1x256xi32>
    %c0_i32_16 = arith.constant 0 : i32
    %34 = vector.broadcast %c0_i32_16 : i32 to vector<1x256xi32>
    %35 = arith.cmpi slt, %31, %34 : vector<1x256xi32>
    %c0_i32_17 = arith.constant 0 : i32
    %36 = arith.cmpi slt, %29, %c0_i32_17 : i32
    %37 = vector.broadcast %36 : i1 to vector<1x256xi1>
    %38 = vector.broadcast %37 : vector<1x256xi1> to vector<1x256xi1>
    %39 = arith.xori %35, %38 : vector<1x256xi1>
    %40 = arith.andi %39, %33 : vector<1x256xi1>
    %41 = vector.broadcast %29 : i32 to vector<1x256xi32>
    %42 = arith.addi %31, %41 : vector<1x256xi32>
    %43 = arith.select %40, %42, %31 : vector<1x256xi1>, vector<1x256xi32>
    %c0_18 = arith.constant 0 : index
    %44 = memref.load %arg4[%c0_18] : memref<98xf32, #tpu.memory_space<smem>>
    %c1 = arith.constant 1 : index
    %45 = memref.load %arg4[%c1] : memref<98xf32, #tpu.memory_space<smem>>
    %c2 = arith.constant 2 : index
    %46 = memref.load %arg4[%c2] : memref<98xf32, #tpu.memory_space<smem>>
    %c3 = arith.constant 3 : index
    %47 = memref.load %arg4[%c3] : memref<98xf32, #tpu.memory_space<smem>>
    %c4 = arith.constant 4 : index
    %48 = memref.load %arg4[%c4] : memref<98xf32, #tpu.memory_space<smem>>
    %c5 = arith.constant 5 : index
    %49 = memref.load %arg4[%c5] : memref<98xf32, #tpu.memory_space<smem>>
    %c6 = arith.constant 6 : index
    %50 = memref.load %arg4[%c6] : memref<98xf32, #tpu.memory_space<smem>>
    %c7 = arith.constant 7 : index
    %51 = memref.load %arg4[%c7] : memref<98xf32, #tpu.memory_space<smem>>
    %c8 = arith.constant 8 : index
    %52 = memref.load %arg4[%c8] : memref<98xf32, #tpu.memory_space<smem>>
    %c9 = arith.constant 9 : index
    %53 = memref.load %arg4[%c9] : memref<98xf32, #tpu.memory_space<smem>>
    %c10 = arith.constant 10 : index
    %54 = memref.load %arg4[%c10] : memref<98xf32, #tpu.memory_space<smem>>
    %c11 = arith.constant 11 : index
    %55 = memref.load %arg4[%c11] : memref<98xf32, #tpu.memory_space<smem>>
    %c12 = arith.constant 12 : index
    %56 = memref.load %arg4[%c12] : memref<98xf32, #tpu.memory_space<smem>>
    %c13 = arith.constant 13 : index
    %57 = memref.load %arg4[%c13] : memref<98xf32, #tpu.memory_space<smem>>
    %c14 = arith.constant 14 : index
    %58 = memref.load %arg4[%c14] : memref<98xf32, #tpu.memory_space<smem>>
    %c15 = arith.constant 15 : index
    %59 = memref.load %arg4[%c15] : memref<98xf32, #tpu.memory_space<smem>>
    %c16 = arith.constant 16 : index
    %60 = memref.load %arg4[%c16] : memref<98xf32, #tpu.memory_space<smem>>
    %c17 = arith.constant 17 : index
    %61 = memref.load %arg4[%c17] : memref<98xf32, #tpu.memory_space<smem>>
    %c18 = arith.constant 18 : index
    %62 = memref.load %arg4[%c18] : memref<98xf32, #tpu.memory_space<smem>>
    %c19 = arith.constant 19 : index
    %63 = memref.load %arg4[%c19] : memref<98xf32, #tpu.memory_space<smem>>
    %c20 = arith.constant 20 : index
    %64 = memref.load %arg4[%c20] : memref<98xf32, #tpu.memory_space<smem>>
    %c21 = arith.constant 21 : index
    %65 = memref.load %arg4[%c21] : memref<98xf32, #tpu.memory_space<smem>>
    %c22 = arith.constant 22 : index
    %66 = memref.load %arg4[%c22] : memref<98xf32, #tpu.memory_space<smem>>
    %c23 = arith.constant 23 : index
    %67 = memref.load %arg4[%c23] : memref<98xf32, #tpu.memory_space<smem>>
    %c24 = arith.constant 24 : index
    %68 = memref.load %arg4[%c24] : memref<98xf32, #tpu.memory_space<smem>>
    %c25 = arith.constant 25 : index
    %69 = memref.load %arg4[%c25] : memref<98xf32, #tpu.memory_space<smem>>
    %c26 = arith.constant 26 : index
    %70 = memref.load %arg4[%c26] : memref<98xf32, #tpu.memory_space<smem>>
    %c27 = arith.constant 27 : index
    %71 = memref.load %arg4[%c27] : memref<98xf32, #tpu.memory_space<smem>>
    %c28 = arith.constant 28 : index
    %72 = memref.load %arg4[%c28] : memref<98xf32, #tpu.memory_space<smem>>
    %c29 = arith.constant 29 : index
    %73 = memref.load %arg4[%c29] : memref<98xf32, #tpu.memory_space<smem>>
    %c30 = arith.constant 30 : index
    %74 = memref.load %arg4[%c30] : memref<98xf32, #tpu.memory_space<smem>>
    %c31 = arith.constant 31 : index
    %75 = memref.load %arg4[%c31] : memref<98xf32, #tpu.memory_space<smem>>
    %c32 = arith.constant 32 : index
    %76 = memref.load %arg4[%c32] : memref<98xf32, #tpu.memory_space<smem>>
    %c33 = arith.constant 33 : index
    %77 = memref.load %arg4[%c33] : memref<98xf32, #tpu.memory_space<smem>>
    %c34 = arith.constant 34 : index
    %78 = memref.load %arg4[%c34] : memref<98xf32, #tpu.memory_space<smem>>
    %c35 = arith.constant 35 : index
    %79 = memref.load %arg4[%c35] : memref<98xf32, #tpu.memory_space<smem>>
    %c36 = arith.constant 36 : index
    %80 = memref.load %arg4[%c36] : memref<98xf32, #tpu.memory_space<smem>>
    %c37 = arith.constant 37 : index
    %81 = memref.load %arg4[%c37] : memref<98xf32, #tpu.memory_space<smem>>
    %c38 = arith.constant 38 : index
    %82 = memref.load %arg4[%c38] : memref<98xf32, #tpu.memory_space<smem>>
    %c39 = arith.constant 39 : index
    %83 = memref.load %arg4[%c39] : memref<98xf32, #tpu.memory_space<smem>>
    %c40 = arith.constant 40 : index
    %84 = memref.load %arg4[%c40] : memref<98xf32, #tpu.memory_space<smem>>
    %c41 = arith.constant 41 : index
    %85 = memref.load %arg4[%c41] : memref<98xf32, #tpu.memory_space<smem>>
    %c42 = arith.constant 42 : index
    %86 = memref.load %arg4[%c42] : memref<98xf32, #tpu.memory_space<smem>>
    %c43 = arith.constant 43 : index
    %87 = memref.load %arg4[%c43] : memref<98xf32, #tpu.memory_space<smem>>
    %c44 = arith.constant 44 : index
    %88 = memref.load %arg4[%c44] : memref<98xf32, #tpu.memory_space<smem>>
    %c45 = arith.constant 45 : index
    %89 = memref.load %arg4[%c45] : memref<98xf32, #tpu.memory_space<smem>>
    %c46 = arith.constant 46 : index
    %90 = memref.load %arg4[%c46] : memref<98xf32, #tpu.memory_space<smem>>
    %c47 = arith.constant 47 : index
    %91 = memref.load %arg4[%c47] : memref<98xf32, #tpu.memory_space<smem>>
    %c48 = arith.constant 48 : index
    %92 = memref.load %arg4[%c48] : memref<98xf32, #tpu.memory_space<smem>>
    %c49 = arith.constant 49 : index
    %93 = memref.load %arg4[%c49] : memref<98xf32, #tpu.memory_space<smem>>
    %c50 = arith.constant 50 : index
    %94 = memref.load %arg4[%c50] : memref<98xf32, #tpu.memory_space<smem>>
    %c51 = arith.constant 51 : index
    %95 = memref.load %arg4[%c51] : memref<98xf32, #tpu.memory_space<smem>>
    %c52 = arith.constant 52 : index
    %96 = memref.load %arg4[%c52] : memref<98xf32, #tpu.memory_space<smem>>
    %c53 = arith.constant 53 : index
    %97 = memref.load %arg4[%c53] : memref<98xf32, #tpu.memory_space<smem>>
    %c54 = arith.constant 54 : index
    %98 = memref.load %arg4[%c54] : memref<98xf32, #tpu.memory_space<smem>>
    %c55 = arith.constant 55 : index
    %99 = memref.load %arg4[%c55] : memref<98xf32, #tpu.memory_space<smem>>
    %c56 = arith.constant 56 : index
    %100 = memref.load %arg4[%c56] : memref<98xf32, #tpu.memory_space<smem>>
    %c57 = arith.constant 57 : index
    %101 = memref.load %arg4[%c57] : memref<98xf32, #tpu.memory_space<smem>>
    %c58 = arith.constant 58 : index
    %102 = memref.load %arg4[%c58] : memref<98xf32, #tpu.memory_space<smem>>
    %c59 = arith.constant 59 : index
    %103 = memref.load %arg4[%c59] : memref<98xf32, #tpu.memory_space<smem>>
    %c60 = arith.constant 60 : index
    %104 = memref.load %arg4[%c60] : memref<98xf32, #tpu.memory_space<smem>>
    %c61 = arith.constant 61 : index
    %105 = memref.load %arg4[%c61] : memref<98xf32, #tpu.memory_space<smem>>
    %c62 = arith.constant 62 : index
    %106 = memref.load %arg4[%c62] : memref<98xf32, #tpu.memory_space<smem>>
    %c63 = arith.constant 63 : index
    %107 = memref.load %arg4[%c63] : memref<98xf32, #tpu.memory_space<smem>>
    %c64 = arith.constant 64 : index
    %108 = memref.load %arg4[%c64] : memref<98xf32, #tpu.memory_space<smem>>
    %c65 = arith.constant 65 : index
    %109 = memref.load %arg4[%c65] : memref<98xf32, #tpu.memory_space<smem>>
    %c66 = arith.constant 66 : index
    %110 = memref.load %arg4[%c66] : memref<98xf32, #tpu.memory_space<smem>>
    %c67 = arith.constant 67 : index
    %111 = memref.load %arg4[%c67] : memref<98xf32, #tpu.memory_space<smem>>
    %c68 = arith.constant 68 : index
    %112 = memref.load %arg4[%c68] : memref<98xf32, #tpu.memory_space<smem>>
    %c69 = arith.constant 69 : index
    %113 = memref.load %arg4[%c69] : memref<98xf32, #tpu.memory_space<smem>>
    %c70 = arith.constant 70 : index
    %114 = memref.load %arg4[%c70] : memref<98xf32, #tpu.memory_space<smem>>
    %c71 = arith.constant 71 : index
    %115 = memref.load %arg4[%c71] : memref<98xf32, #tpu.memory_space<smem>>
    %c72 = arith.constant 72 : index
    %116 = memref.load %arg4[%c72] : memref<98xf32, #tpu.memory_space<smem>>
    %c73 = arith.constant 73 : index
    %117 = memref.load %arg4[%c73] : memref<98xf32, #tpu.memory_space<smem>>
    %c74 = arith.constant 74 : index
    %118 = memref.load %arg4[%c74] : memref<98xf32, #tpu.memory_space<smem>>
    %c75 = arith.constant 75 : index
    %119 = memref.load %arg4[%c75] : memref<98xf32, #tpu.memory_space<smem>>
    %c76 = arith.constant 76 : index
    %120 = memref.load %arg4[%c76] : memref<98xf32, #tpu.memory_space<smem>>
    %c77 = arith.constant 77 : index
    %121 = memref.load %arg4[%c77] : memref<98xf32, #tpu.memory_space<smem>>
    %c78 = arith.constant 78 : index
    %122 = memref.load %arg4[%c78] : memref<98xf32, #tpu.memory_space<smem>>
    %c79 = arith.constant 79 : index
    %123 = memref.load %arg4[%c79] : memref<98xf32, #tpu.memory_space<smem>>
    %c80 = arith.constant 80 : index
    %124 = memref.load %arg4[%c80] : memref<98xf32, #tpu.memory_space<smem>>
    %c81 = arith.constant 81 : index
    %125 = memref.load %arg4[%c81] : memref<98xf32, #tpu.memory_space<smem>>
    %c82 = arith.constant 82 : index
    %126 = memref.load %arg4[%c82] : memref<98xf32, #tpu.memory_space<smem>>
    %c83 = arith.constant 83 : index
    %127 = memref.load %arg4[%c83] : memref<98xf32, #tpu.memory_space<smem>>
    %c84 = arith.constant 84 : index
    %128 = memref.load %arg4[%c84] : memref<98xf32, #tpu.memory_space<smem>>
    %c85 = arith.constant 85 : index
    %129 = memref.load %arg4[%c85] : memref<98xf32, #tpu.memory_space<smem>>
    %c86 = arith.constant 86 : index
    %130 = memref.load %arg4[%c86] : memref<98xf32, #tpu.memory_space<smem>>
    %c87 = arith.constant 87 : index
    %131 = memref.load %arg4[%c87] : memref<98xf32, #tpu.memory_space<smem>>
    %c88 = arith.constant 88 : index
    %132 = memref.load %arg4[%c88] : memref<98xf32, #tpu.memory_space<smem>>
    %c89 = arith.constant 89 : index
    %133 = memref.load %arg4[%c89] : memref<98xf32, #tpu.memory_space<smem>>
    %c90 = arith.constant 90 : index
    %134 = memref.load %arg4[%c90] : memref<98xf32, #tpu.memory_space<smem>>
    %c91 = arith.constant 91 : index
    %135 = memref.load %arg4[%c91] : memref<98xf32, #tpu.memory_space<smem>>
    %c92 = arith.constant 92 : index
    %136 = memref.load %arg4[%c92] : memref<98xf32, #tpu.memory_space<smem>>
    %c93 = arith.constant 93 : index
    %137 = memref.load %arg4[%c93] : memref<98xf32, #tpu.memory_space<smem>>
    %c94 = arith.constant 94 : index
    %138 = memref.load %arg4[%c94] : memref<98xf32, #tpu.memory_space<smem>>
    %c95 = arith.constant 95 : index
    %139 = memref.load %arg4[%c95] : memref<98xf32, #tpu.memory_space<smem>>
    %c96 = arith.constant 96 : index
    %140 = memref.load %arg4[%c96] : memref<98xf32, #tpu.memory_space<smem>>
    %c97 = arith.constant 97 : index
    %141 = memref.load %arg4[%c97] : memref<98xf32, #tpu.memory_space<smem>>
    %cst_19 = arith.constant 0.000000e+00 : f32
    %142 = vector.broadcast %cst_19 : f32 to vector<1x256xf32>
    %c3_i32 = arith.constant 3 : i32
    %143 = tpu.dynamic_rotate %26 by %c3_i32 dim 1 : vector<1x256xf32>, i32 -> vector<1x256xf32>
    %c3_i32_20 = arith.constant 3 : i32
    %144 = tpu.dynamic_rotate %23 by %c3_i32_20 dim 1 : vector<1x256xf32>, i32 -> vector<1x256xf32>
    %c3_i32_21 = arith.constant 3 : i32
    %145 = vector.broadcast %c3_i32_21 : i32 to vector<1x256xi32>
    %146 = arith.cmpi sge, %43, %145 : vector<1x256xi32>
    %cst_22 = arith.constant 0.000000e+00 : f32
    %147 = vector.broadcast %cst_22 : f32 to vector<1x256xf32>
    %148 = arith.select %146, %143, %147 : vector<1x256xi1>, vector<1x256xf32>
    %cst_23 = arith.constant 0.000000e+00 : f32
    %149 = vector.broadcast %cst_23 : f32 to vector<1x256xf32>
    %150 = arith.select %146, %144, %149 : vector<1x256xi1>, vector<1x256xf32>
    %151 = vector.broadcast %44 : f32 to vector<1x256xf32>
    %152 = arith.mulf %151, %148 : vector<1x256xf32>
    %153 = vector.broadcast %93 : f32 to vector<1x256xf32>
    %154 = arith.mulf %153, %150 : vector<1x256xf32>
    %155 = arith.addf %152, %154 : vector<1x256xf32>
    %c48_i32 = arith.constant 48 : i32
    %156 = tpu.dynamic_rotate %155 by %c48_i32 dim 1 : vector<1x256xf32>, i32 -> vector<1x256xf32>
    %c48_i32_24 = arith.constant 48 : i32
    %157 = vector.broadcast %c48_i32_24 : i32 to vector<1x256xi32>
    %158 = arith.cmpi sge, %27, %157 : vector<1x256xi32>
    %cst_25 = arith.constant 0.000000e+00 : f32
    %159 = vector.broadcast %cst_25 : f32 to vector<1x256xf32>
    %160 = arith.select %158, %156, %159 : vector<1x256xi1>, vector<1x256xf32>
    %161 = arith.addf %142, %160 : vector<1x256xf32>
    %162 = vector.broadcast %51 : f32 to vector<1x256xf32>
    %163 = arith.mulf %162, %148 : vector<1x256xf32>
    %164 = vector.broadcast %100 : f32 to vector<1x256xf32>
    %165 = arith.mulf %164, %150 : vector<1x256xf32>
    %166 = arith.addf %163, %165 : vector<1x256xf32>
    %c32_i32 = arith.constant 32 : i32
    %167 = tpu.dynamic_rotate %166 by %c32_i32 dim 1 : vector<1x256xf32>, i32 -> vector<1x256xf32>
    %c32_i32_26 = arith.constant 32 : i32
    %168 = vector.broadcast %c32_i32_26 : i32 to vector<1x256xi32>
    %169 = arith.cmpi sge, %27, %168 : vector<1x256xi32>
    %cst_27 = arith.constant 0.000000e+00 : f32
    %170 = vector.broadcast %cst_27 : f32 to vector<1x256xf32>
    %171 = arith.select %169, %167, %170 : vector<1x256xi1>, vector<1x256xf32>
    %172 = arith.addf %161, %171 : vector<1x256xf32>
    %173 = vector.broadcast %58 : f32 to vector<1x256xf32>
    %174 = arith.mulf %173, %148 : vector<1x256xf32>
    %175 = vector.broadcast %107 : f32 to vector<1x256xf32>
    %176 = arith.mulf %175, %150 : vector<1x256xf32>
    %177 = arith.addf %174, %176 : vector<1x256xf32>
    %c16_i32_28 = arith.constant 16 : i32
    %178 = tpu.dynamic_rotate %177 by %c16_i32_28 dim 1 : vector<1x256xf32>, i32 -> vector<1x256xf32>
    %c16_i32_29 = arith.constant 16 : i32
    %179 = vector.broadcast %c16_i32_29 : i32 to vector<1x256xi32>
    %180 = arith.cmpi sge, %27, %179 : vector<1x256xi32>
    %cst_30 = arith.constant 0.000000e+00 : f32
    %181 = vector.broadcast %cst_30 : f32 to vector<1x256xf32>
    %182 = arith.select %180, %178, %181 : vector<1x256xi1>, vector<1x256xf32>
    %183 = arith.addf %172, %182 : vector<1x256xf32>
    %184 = vector.broadcast %65 : f32 to vector<1x256xf32>
    %185 = arith.mulf %184, %148 : vector<1x256xf32>
    %186 = vector.broadcast %114 : f32 to vector<1x256xf32>
    %187 = arith.mulf %186, %150 : vector<1x256xf32>
    %188 = arith.addf %185, %187 : vector<1x256xf32>
    %189 = arith.addf %183, %188 : vector<1x256xf32>
    %190 = vector.broadcast %72 : f32 to vector<1x256xf32>
    %191 = arith.mulf %190, %148 : vector<1x256xf32>
    %192 = vector.broadcast %121 : f32 to vector<1x256xf32>
    %193 = arith.mulf %192, %150 : vector<1x256xf32>
    %194 = arith.addf %191, %193 : vector<1x256xf32>
    %c240_i32 = arith.constant 240 : i32
    %195 = tpu.dynamic_rotate %194 by %c240_i32 dim 1 : vector<1x256xf32>, i32 -> vector<1x256xf32>
    %c240_i32_31 = arith.constant 240 : i32
    %196 = vector.broadcast %c240_i32_31 : i32 to vector<1x256xi32>
    %197 = arith.cmpi slt, %27, %196 : vector<1x256xi32>
    %cst_32 = arith.constant 0.000000e+00 : f32
    %198 = vector.broadcast %cst_32 : f32 to vector<1x256xf32>
    %199 = arith.select %197, %195, %198 : vector<1x256xi1>, vector<1x256xf32>
    %200 = arith.addf %189, %199 : vector<1x256xf32>
    %201 = vector.broadcast %79 : f32 to vector<1x256xf32>
    %202 = arith.mulf %201, %148 : vector<1x256xf32>
    %203 = vector.broadcast %128 : f32 to vector<1x256xf32>
    %204 = arith.mulf %203, %150 : vector<1x256xf32>
    %205 = arith.addf %202, %204 : vector<1x256xf32>
    %c224_i32 = arith.constant 224 : i32
    %206 = tpu.dynamic_rotate %205 by %c224_i32 dim 1 : vector<1x256xf32>, i32 -> vector<1x256xf32>
    %c224_i32_33 = arith.constant 224 : i32
    %207 = vector.broadcast %c224_i32_33 : i32 to vector<1x256xi32>
    %208 = arith.cmpi slt, %27, %207 : vector<1x256xi32>
    %cst_34 = arith.constant 0.000000e+00 : f32
    %209 = vector.broadcast %cst_34 : f32 to vector<1x256xf32>
    %210 = arith.select %208, %206, %209 : vector<1x256xi1>, vector<1x256xf32>
    %211 = arith.addf %200, %210 : vector<1x256xf32>
    %212 = vector.broadcast %86 : f32 to vector<1x256xf32>
    %213 = arith.mulf %212, %148 : vector<1x256xf32>
    %214 = vector.broadcast %135 : f32 to vector<1x256xf32>
    %215 = arith.mulf %214, %150 : vector<1x256xf32>
    %216 = arith.addf %213, %215 : vector<1x256xf32>
    %c208_i32 = arith.constant 208 : i32
    %217 = tpu.dynamic_rotate %216 by %c208_i32 dim 1 : vector<1x256xf32>, i32 -> vector<1x256xf32>
    %c208_i32_35 = arith.constant 208 : i32
    %218 = vector.broadcast %c208_i32_35 : i32 to vector<1x256xi32>
    %219 = arith.cmpi slt, %27, %218 : vector<1x256xi32>
    %cst_36 = arith.constant 0.000000e+00 : f32
    %220 = vector.broadcast %cst_36 : f32 to vector<1x256xf32>
    %221 = arith.select %219, %217, %220 : vector<1x256xi1>, vector<1x256xf32>
    %222 = arith.addf %211, %221 : vector<1x256xf32>
    %c2_i32 = arith.constant 2 : i32
    %223 = tpu.dynamic_rotate %26 by %c2_i32 dim 1 : vector<1x256xf32>, i32 -> vector<1x256xf32>
    %c2_i32_37 = arith.constant 2 : i32
    %224 = tpu.dynamic_rotate %23 by %c2_i32_37 dim 1 : vector<1x256xf32>, i32 -> vector<1x256xf32>
    %c2_i32_38 = arith.constant 2 : i32
    %225 = vector.broadcast %c2_i32_38 : i32 to vector<1x256xi32>
    %226 = arith.cmpi sge, %43, %225 : vector<1x256xi32>
    %cst_39 = arith.constant 0.000000e+00 : f32
    %227 = vector.broadcast %cst_39 : f32 to vector<1x256xf32>
    %228 = arith.select %226, %223, %227 : vector<1x256xi1>, vector<1x256xf32>
    %cst_40 = arith.constant 0.000000e+00 : f32
    %229 = vector.broadcast %cst_40 : f32 to vector<1x256xf32>
    %230 = arith.select %226, %224, %229 : vector<1x256xi1>, vector<1x256xf32>
    %231 = vector.broadcast %45 : f32 to vector<1x256xf32>
    %232 = arith.mulf %231, %228 : vector<1x256xf32>
    %233 = vector.broadcast %94 : f32 to vector<1x256xf32>
    %234 = arith.mulf %233, %230 : vector<1x256xf32>
    %235 = arith.addf %232, %234 : vector<1x256xf32>
    %c48_i32_41 = arith.constant 48 : i32
    %236 = tpu.dynamic_rotate %235 by %c48_i32_41 dim 1 : vector<1x256xf32>, i32 -> vector<1x256xf32>
    %c48_i32_42 = arith.constant 48 : i32
    %237 = vector.broadcast %c48_i32_42 : i32 to vector<1x256xi32>
    %238 = arith.cmpi sge, %27, %237 : vector<1x256xi32>
    %cst_43 = arith.constant 0.000000e+00 : f32
    %239 = vector.broadcast %cst_43 : f32 to vector<1x256xf32>
    %240 = arith.select %238, %236, %239 : vector<1x256xi1>, vector<1x256xf32>
    %241 = arith.addf %222, %240 : vector<1x256xf32>
    %242 = vector.broadcast %52 : f32 to vector<1x256xf32>
    %243 = arith.mulf %242, %228 : vector<1x256xf32>
    %244 = vector.broadcast %101 : f32 to vector<1x256xf32>
    %245 = arith.mulf %244, %230 : vector<1x256xf32>
    %246 = arith.addf %243, %245 : vector<1x256xf32>
    %c32_i32_44 = arith.constant 32 : i32
    %247 = tpu.dynamic_rotate %246 by %c32_i32_44 dim 1 : vector<1x256xf32>, i32 -> vector<1x256xf32>
    %c32_i32_45 = arith.constant 32 : i32
    %248 = vector.broadcast %c32_i32_45 : i32 to vector<1x256xi32>
    %249 = arith.cmpi sge, %27, %248 : vector<1x256xi32>
    %cst_46 = arith.constant 0.000000e+00 : f32
    %250 = vector.broadcast %cst_46 : f32 to vector<1x256xf32>
    %251 = arith.select %249, %247, %250 : vector<1x256xi1>, vector<1x256xf32>
    %252 = arith.addf %241, %251 : vector<1x256xf32>
    %253 = vector.broadcast %59 : f32 to vector<1x256xf32>
    %254 = arith.mulf %253, %228 : vector<1x256xf32>
    %255 = vector.broadcast %108 : f32 to vector<1x256xf32>
    %256 = arith.mulf %255, %230 : vector<1x256xf32>
    %257 = arith.addf %254, %256 : vector<1x256xf32>
    %c16_i32_47 = arith.constant 16 : i32
    %258 = tpu.dynamic_rotate %257 by %c16_i32_47 dim 1 : vector<1x256xf32>, i32 -> vector<1x256xf32>
    %c16_i32_48 = arith.constant 16 : i32
    %259 = vector.broadcast %c16_i32_48 : i32 to vector<1x256xi32>
    %260 = arith.cmpi sge, %27, %259 : vector<1x256xi32>
    %cst_49 = arith.constant 0.000000e+00 : f32
    %261 = vector.broadcast %cst_49 : f32 to vector<1x256xf32>
    %262 = arith.select %260, %258, %261 : vector<1x256xi1>, vector<1x256xf32>
    %263 = arith.addf %252, %262 : vector<1x256xf32>
    %264 = vector.broadcast %66 : f32 to vector<1x256xf32>
    %265 = arith.mulf %264, %228 : vector<1x256xf32>
    %266 = vector.broadcast %115 : f32 to vector<1x256xf32>
    %267 = arith.mulf %266, %230 : vector<1x256xf32>
    %268 = arith.addf %265, %267 : vector<1x256xf32>
    %269 = arith.addf %263, %268 : vector<1x256xf32>
    %270 = vector.broadcast %73 : f32 to vector<1x256xf32>
    %271 = arith.mulf %270, %228 : vector<1x256xf32>
    %272 = vector.broadcast %122 : f32 to vector<1x256xf32>
    %273 = arith.mulf %272, %230 : vector<1x256xf32>
    %274 = arith.addf %271, %273 : vector<1x256xf32>
    %c240_i32_50 = arith.constant 240 : i32
    %275 = tpu.dynamic_rotate %274 by %c240_i32_50 dim 1 : vector<1x256xf32>, i32 -> vector<1x256xf32>
    %c240_i32_51 = arith.constant 240 : i32
    %276 = vector.broadcast %c240_i32_51 : i32 to vector<1x256xi32>
    %277 = arith.cmpi slt, %27, %276 : vector<1x256xi32>
    %cst_52 = arith.constant 0.000000e+00 : f32
    %278 = vector.broadcast %cst_52 : f32 to vector<1x256xf32>
    %279 = arith.select %277, %275, %278 : vector<1x256xi1>, vector<1x256xf32>
    %280 = arith.addf %269, %279 : vector<1x256xf32>
    %281 = vector.broadcast %80 : f32 to vector<1x256xf32>
    %282 = arith.mulf %281, %228 : vector<1x256xf32>
    %283 = vector.broadcast %129 : f32 to vector<1x256xf32>
    %284 = arith.mulf %283, %230 : vector<1x256xf32>
    %285 = arith.addf %282, %284 : vector<1x256xf32>
    %c224_i32_53 = arith.constant 224 : i32
    %286 = tpu.dynamic_rotate %285 by %c224_i32_53 dim 1 : vector<1x256xf32>, i32 -> vector<1x256xf32>
    %c224_i32_54 = arith.constant 224 : i32
    %287 = vector.broadcast %c224_i32_54 : i32 to vector<1x256xi32>
    %288 = arith.cmpi slt, %27, %287 : vector<1x256xi32>
    %cst_55 = arith.constant 0.000000e+00 : f32
    %289 = vector.broadcast %cst_55 : f32 to vector<1x256xf32>
    %290 = arith.select %288, %286, %289 : vector<1x256xi1>, vector<1x256xf32>
    %291 = arith.addf %280, %290 : vector<1x256xf32>
    %292 = vector.broadcast %87 : f32 to vector<1x256xf32>
    %293 = arith.mulf %292, %228 : vector<1x256xf32>
    %294 = vector.broadcast %136 : f32 to vector<1x256xf32>
    %295 = arith.mulf %294, %230 : vector<1x256xf32>
    %296 = arith.addf %293, %295 : vector<1x256xf32>
    %c208_i32_56 = arith.constant 208 : i32
    %297 = tpu.dynamic_rotate %296 by %c208_i32_56 dim 1 : vector<1x256xf32>, i32 -> vector<1x256xf32>
    %c208_i32_57 = arith.constant 208 : i32
    %298 = vector.broadcast %c208_i32_57 : i32 to vector<1x256xi32>
    %299 = arith.cmpi slt, %27, %298 : vector<1x256xi32>
    %cst_58 = arith.constant 0.000000e+00 : f32
    %300 = vector.broadcast %cst_58 : f32 to vector<1x256xf32>
    %301 = arith.select %299, %297, %300 : vector<1x256xi1>, vector<1x256xf32>
    %302 = arith.addf %291, %301 : vector<1x256xf32>
    %c1_i32_59 = arith.constant 1 : i32
    %303 = tpu.dynamic_rotate %26 by %c1_i32_59 dim 1 : vector<1x256xf32>, i32 -> vector<1x256xf32>
    %c1_i32_60 = arith.constant 1 : i32
    %304 = tpu.dynamic_rotate %23 by %c1_i32_60 dim 1 : vector<1x256xf32>, i32 -> vector<1x256xf32>
    %c1_i32_61 = arith.constant 1 : i32
    %305 = vector.broadcast %c1_i32_61 : i32 to vector<1x256xi32>
    %306 = arith.cmpi sge, %43, %305 : vector<1x256xi32>
    %cst_62 = arith.constant 0.000000e+00 : f32
    %307 = vector.broadcast %cst_62 : f32 to vector<1x256xf32>
    %308 = arith.select %306, %303, %307 : vector<1x256xi1>, vector<1x256xf32>
    %cst_63 = arith.constant 0.000000e+00 : f32
    %309 = vector.broadcast %cst_63 : f32 to vector<1x256xf32>
    %310 = arith.select %306, %304, %309 : vector<1x256xi1>, vector<1x256xf32>
    %311 = vector.broadcast %46 : f32 to vector<1x256xf32>
    %312 = arith.mulf %311, %308 : vector<1x256xf32>
    %313 = vector.broadcast %95 : f32 to vector<1x256xf32>
    %314 = arith.mulf %313, %310 : vector<1x256xf32>
    %315 = arith.addf %312, %314 : vector<1x256xf32>
    %c48_i32_64 = arith.constant 48 : i32
    %316 = tpu.dynamic_rotate %315 by %c48_i32_64 dim 1 : vector<1x256xf32>, i32 -> vector<1x256xf32>
    %c48_i32_65 = arith.constant 48 : i32
    %317 = vector.broadcast %c48_i32_65 : i32 to vector<1x256xi32>
    %318 = arith.cmpi sge, %27, %317 : vector<1x256xi32>
    %cst_66 = arith.constant 0.000000e+00 : f32
    %319 = vector.broadcast %cst_66 : f32 to vector<1x256xf32>
    %320 = arith.select %318, %316, %319 : vector<1x256xi1>, vector<1x256xf32>
    %321 = arith.addf %302, %320 : vector<1x256xf32>
    %322 = vector.broadcast %53 : f32 to vector<1x256xf32>
    %323 = arith.mulf %322, %308 : vector<1x256xf32>
    %324 = vector.broadcast %102 : f32 to vector<1x256xf32>
    %325 = arith.mulf %324, %310 : vector<1x256xf32>
    %326 = arith.addf %323, %325 : vector<1x256xf32>
    %c32_i32_67 = arith.constant 32 : i32
    %327 = tpu.dynamic_rotate %326 by %c32_i32_67 dim 1 : vector<1x256xf32>, i32 -> vector<1x256xf32>
    %c32_i32_68 = arith.constant 32 : i32
    %328 = vector.broadcast %c32_i32_68 : i32 to vector<1x256xi32>
    %329 = arith.cmpi sge, %27, %328 : vector<1x256xi32>
    %cst_69 = arith.constant 0.000000e+00 : f32
    %330 = vector.broadcast %cst_69 : f32 to vector<1x256xf32>
    %331 = arith.select %329, %327, %330 : vector<1x256xi1>, vector<1x256xf32>
    %332 = arith.addf %321, %331 : vector<1x256xf32>
    %333 = vector.broadcast %60 : f32 to vector<1x256xf32>
    %334 = arith.mulf %333, %308 : vector<1x256xf32>
    %335 = vector.broadcast %109 : f32 to vector<1x256xf32>
    %336 = arith.mulf %335, %310 : vector<1x256xf32>
    %337 = arith.addf %334, %336 : vector<1x256xf32>
    %c16_i32_70 = arith.constant 16 : i32
    %338 = tpu.dynamic_rotate %337 by %c16_i32_70 dim 1 : vector<1x256xf32>, i32 -> vector<1x256xf32>
    %c16_i32_71 = arith.constant 16 : i32
    %339 = vector.broadcast %c16_i32_71 : i32 to vector<1x256xi32>
    %340 = arith.cmpi sge, %27, %339 : vector<1x256xi32>
    %cst_72 = arith.constant 0.000000e+00 : f32
    %341 = vector.broadcast %cst_72 : f32 to vector<1x256xf32>
    %342 = arith.select %340, %338, %341 : vector<1x256xi1>, vector<1x256xf32>
    %343 = arith.addf %332, %342 : vector<1x256xf32>
    %344 = vector.broadcast %67 : f32 to vector<1x256xf32>
    %345 = arith.mulf %344, %308 : vector<1x256xf32>
    %346 = vector.broadcast %116 : f32 to vector<1x256xf32>
    %347 = arith.mulf %346, %310 : vector<1x256xf32>
    %348 = arith.addf %345, %347 : vector<1x256xf32>
    %349 = arith.addf %343, %348 : vector<1x256xf32>
    %350 = vector.broadcast %74 : f32 to vector<1x256xf32>
    %351 = arith.mulf %350, %308 : vector<1x256xf32>
    %352 = vector.broadcast %123 : f32 to vector<1x256xf32>
    %353 = arith.mulf %352, %310 : vector<1x256xf32>
    %354 = arith.addf %351, %353 : vector<1x256xf32>
    %c240_i32_73 = arith.constant 240 : i32
    %355 = tpu.dynamic_rotate %354 by %c240_i32_73 dim 1 : vector<1x256xf32>, i32 -> vector<1x256xf32>
    %c240_i32_74 = arith.constant 240 : i32
    %356 = vector.broadcast %c240_i32_74 : i32 to vector<1x256xi32>
    %357 = arith.cmpi slt, %27, %356 : vector<1x256xi32>
    %cst_75 = arith.constant 0.000000e+00 : f32
    %358 = vector.broadcast %cst_75 : f32 to vector<1x256xf32>
    %359 = arith.select %357, %355, %358 : vector<1x256xi1>, vector<1x256xf32>
    %360 = arith.addf %349, %359 : vector<1x256xf32>
    %361 = vector.broadcast %81 : f32 to vector<1x256xf32>
    %362 = arith.mulf %361, %308 : vector<1x256xf32>
    %363 = vector.broadcast %130 : f32 to vector<1x256xf32>
    %364 = arith.mulf %363, %310 : vector<1x256xf32>
    %365 = arith.addf %362, %364 : vector<1x256xf32>
    %c224_i32_76 = arith.constant 224 : i32
    %366 = tpu.dynamic_rotate %365 by %c224_i32_76 dim 1 : vector<1x256xf32>, i32 -> vector<1x256xf32>
    %c224_i32_77 = arith.constant 224 : i32
    %367 = vector.broadcast %c224_i32_77 : i32 to vector<1x256xi32>
    %368 = arith.cmpi slt, %27, %367 : vector<1x256xi32>
    %cst_78 = arith.constant 0.000000e+00 : f32
    %369 = vector.broadcast %cst_78 : f32 to vector<1x256xf32>
    %370 = arith.select %368, %366, %369 : vector<1x256xi1>, vector<1x256xf32>
    %371 = arith.addf %360, %370 : vector<1x256xf32>
    %372 = vector.broadcast %88 : f32 to vector<1x256xf32>
    %373 = arith.mulf %372, %308 : vector<1x256xf32>
    %374 = vector.broadcast %137 : f32 to vector<1x256xf32>
    %375 = arith.mulf %374, %310 : vector<1x256xf32>
    %376 = arith.addf %373, %375 : vector<1x256xf32>
    %c208_i32_79 = arith.constant 208 : i32
    %377 = tpu.dynamic_rotate %376 by %c208_i32_79 dim 1 : vector<1x256xf32>, i32 -> vector<1x256xf32>
    %c208_i32_80 = arith.constant 208 : i32
    %378 = vector.broadcast %c208_i32_80 : i32 to vector<1x256xi32>
    %379 = arith.cmpi slt, %27, %378 : vector<1x256xi32>
    %cst_81 = arith.constant 0.000000e+00 : f32
    %380 = vector.broadcast %cst_81 : f32 to vector<1x256xf32>
    %381 = arith.select %379, %377, %380 : vector<1x256xi1>, vector<1x256xf32>
    %382 = arith.addf %371, %381 : vector<1x256xf32>
    %383 = vector.broadcast %47 : f32 to vector<1x256xf32>
    %384 = arith.mulf %383, %26 : vector<1x256xf32>
    %385 = vector.broadcast %96 : f32 to vector<1x256xf32>
    %386 = arith.mulf %385, %23 : vector<1x256xf32>
    %387 = arith.addf %384, %386 : vector<1x256xf32>
    %c48_i32_82 = arith.constant 48 : i32
    %388 = tpu.dynamic_rotate %387 by %c48_i32_82 dim 1 : vector<1x256xf32>, i32 -> vector<1x256xf32>
    %c48_i32_83 = arith.constant 48 : i32
    %389 = vector.broadcast %c48_i32_83 : i32 to vector<1x256xi32>
    %390 = arith.cmpi sge, %27, %389 : vector<1x256xi32>
    %cst_84 = arith.constant 0.000000e+00 : f32
    %391 = vector.broadcast %cst_84 : f32 to vector<1x256xf32>
    %392 = arith.select %390, %388, %391 : vector<1x256xi1>, vector<1x256xf32>
    %393 = arith.addf %382, %392 : vector<1x256xf32>
    %394 = vector.broadcast %54 : f32 to vector<1x256xf32>
    %395 = arith.mulf %394, %26 : vector<1x256xf32>
    %396 = vector.broadcast %103 : f32 to vector<1x256xf32>
    %397 = arith.mulf %396, %23 : vector<1x256xf32>
    %398 = arith.addf %395, %397 : vector<1x256xf32>
    %c32_i32_85 = arith.constant 32 : i32
    %399 = tpu.dynamic_rotate %398 by %c32_i32_85 dim 1 : vector<1x256xf32>, i32 -> vector<1x256xf32>
    %c32_i32_86 = arith.constant 32 : i32
    %400 = vector.broadcast %c32_i32_86 : i32 to vector<1x256xi32>
    %401 = arith.cmpi sge, %27, %400 : vector<1x256xi32>
    %cst_87 = arith.constant 0.000000e+00 : f32
    %402 = vector.broadcast %cst_87 : f32 to vector<1x256xf32>
    %403 = arith.select %401, %399, %402 : vector<1x256xi1>, vector<1x256xf32>
    %404 = arith.addf %393, %403 : vector<1x256xf32>
    %405 = vector.broadcast %61 : f32 to vector<1x256xf32>
    %406 = arith.mulf %405, %26 : vector<1x256xf32>
    %407 = vector.broadcast %110 : f32 to vector<1x256xf32>
    %408 = arith.mulf %407, %23 : vector<1x256xf32>
    %409 = arith.addf %406, %408 : vector<1x256xf32>
    %c16_i32_88 = arith.constant 16 : i32
    %410 = tpu.dynamic_rotate %409 by %c16_i32_88 dim 1 : vector<1x256xf32>, i32 -> vector<1x256xf32>
    %c16_i32_89 = arith.constant 16 : i32
    %411 = vector.broadcast %c16_i32_89 : i32 to vector<1x256xi32>
    %412 = arith.cmpi sge, %27, %411 : vector<1x256xi32>
    %cst_90 = arith.constant 0.000000e+00 : f32
    %413 = vector.broadcast %cst_90 : f32 to vector<1x256xf32>
    %414 = arith.select %412, %410, %413 : vector<1x256xi1>, vector<1x256xf32>
    %415 = arith.addf %404, %414 : vector<1x256xf32>
    %416 = vector.broadcast %68 : f32 to vector<1x256xf32>
    %417 = arith.mulf %416, %26 : vector<1x256xf32>
    %418 = vector.broadcast %117 : f32 to vector<1x256xf32>
    %419 = arith.mulf %418, %23 : vector<1x256xf32>
    %420 = arith.addf %417, %419 : vector<1x256xf32>
    %421 = arith.addf %415, %420 : vector<1x256xf32>
    %422 = vector.broadcast %75 : f32 to vector<1x256xf32>
    %423 = arith.mulf %422, %26 : vector<1x256xf32>
    %424 = vector.broadcast %124 : f32 to vector<1x256xf32>
    %425 = arith.mulf %424, %23 : vector<1x256xf32>
    %426 = arith.addf %423, %425 : vector<1x256xf32>
    %c240_i32_91 = arith.constant 240 : i32
    %427 = tpu.dynamic_rotate %426 by %c240_i32_91 dim 1 : vector<1x256xf32>, i32 -> vector<1x256xf32>
    %c240_i32_92 = arith.constant 240 : i32
    %428 = vector.broadcast %c240_i32_92 : i32 to vector<1x256xi32>
    %429 = arith.cmpi slt, %27, %428 : vector<1x256xi32>
    %cst_93 = arith.constant 0.000000e+00 : f32
    %430 = vector.broadcast %cst_93 : f32 to vector<1x256xf32>
    %431 = arith.select %429, %427, %430 : vector<1x256xi1>, vector<1x256xf32>
    %432 = arith.addf %421, %431 : vector<1x256xf32>
    %433 = vector.broadcast %82 : f32 to vector<1x256xf32>
    %434 = arith.mulf %433, %26 : vector<1x256xf32>
    %435 = vector.broadcast %131 : f32 to vector<1x256xf32>
    %436 = arith.mulf %435, %23 : vector<1x256xf32>
    %437 = arith.addf %434, %436 : vector<1x256xf32>
    %c224_i32_94 = arith.constant 224 : i32
    %438 = tpu.dynamic_rotate %437 by %c224_i32_94 dim 1 : vector<1x256xf32>, i32 -> vector<1x256xf32>
    %c224_i32_95 = arith.constant 224 : i32
    %439 = vector.broadcast %c224_i32_95 : i32 to vector<1x256xi32>
    %440 = arith.cmpi slt, %27, %439 : vector<1x256xi32>
    %cst_96 = arith.constant 0.000000e+00 : f32
    %441 = vector.broadcast %cst_96 : f32 to vector<1x256xf32>
    %442 = arith.select %440, %438, %441 : vector<1x256xi1>, vector<1x256xf32>
    %443 = arith.addf %432, %442 : vector<1x256xf32>
    %444 = vector.broadcast %89 : f32 to vector<1x256xf32>
    %445 = arith.mulf %444, %26 : vector<1x256xf32>
    %446 = vector.broadcast %138 : f32 to vector<1x256xf32>
    %447 = arith.mulf %446, %23 : vector<1x256xf32>
    %448 = arith.addf %445, %447 : vector<1x256xf32>
    %c208_i32_97 = arith.constant 208 : i32
    %449 = tpu.dynamic_rotate %448 by %c208_i32_97 dim 1 : vector<1x256xf32>, i32 -> vector<1x256xf32>
    %c208_i32_98 = arith.constant 208 : i32
    %450 = vector.broadcast %c208_i32_98 : i32 to vector<1x256xi32>
    %451 = arith.cmpi slt, %27, %450 : vector<1x256xi32>
    %cst_99 = arith.constant 0.000000e+00 : f32
    %452 = vector.broadcast %cst_99 : f32 to vector<1x256xf32>
    %453 = arith.select %451, %449, %452 : vector<1x256xi1>, vector<1x256xf32>
    %454 = arith.addf %443, %453 : vector<1x256xf32>
    %c255_i32 = arith.constant 255 : i32
    %455 = tpu.dynamic_rotate %26 by %c255_i32 dim 1 : vector<1x256xf32>, i32 -> vector<1x256xf32>
    %c255_i32_100 = arith.constant 255 : i32
    %456 = tpu.dynamic_rotate %23 by %c255_i32_100 dim 1 : vector<1x256xf32>, i32 -> vector<1x256xf32>
    %c15_i32 = arith.constant 15 : i32
    %457 = vector.broadcast %c15_i32 : i32 to vector<1x256xi32>
    %458 = arith.cmpi slt, %43, %457 : vector<1x256xi32>
    %cst_101 = arith.constant 0.000000e+00 : f32
    %459 = vector.broadcast %cst_101 : f32 to vector<1x256xf32>
    %460 = arith.select %458, %455, %459 : vector<1x256xi1>, vector<1x256xf32>
    %cst_102 = arith.constant 0.000000e+00 : f32
    %461 = vector.broadcast %cst_102 : f32 to vector<1x256xf32>
    %462 = arith.select %458, %456, %461 : vector<1x256xi1>, vector<1x256xf32>
    %463 = vector.broadcast %48 : f32 to vector<1x256xf32>
    %464 = arith.mulf %463, %460 : vector<1x256xf32>
    %465 = vector.broadcast %97 : f32 to vector<1x256xf32>
    %466 = arith.mulf %465, %462 : vector<1x256xf32>
    %467 = arith.addf %464, %466 : vector<1x256xf32>
    %c48_i32_103 = arith.constant 48 : i32
    %468 = tpu.dynamic_rotate %467 by %c48_i32_103 dim 1 : vector<1x256xf32>, i32 -> vector<1x256xf32>
    %c48_i32_104 = arith.constant 48 : i32
    %469 = vector.broadcast %c48_i32_104 : i32 to vector<1x256xi32>
    %470 = arith.cmpi sge, %27, %469 : vector<1x256xi32>
    %cst_105 = arith.constant 0.000000e+00 : f32
    %471 = vector.broadcast %cst_105 : f32 to vector<1x256xf32>
    %472 = arith.select %470, %468, %471 : vector<1x256xi1>, vector<1x256xf32>
    %473 = arith.addf %454, %472 : vector<1x256xf32>
    %474 = vector.broadcast %55 : f32 to vector<1x256xf32>
    %475 = arith.mulf %474, %460 : vector<1x256xf32>
    %476 = vector.broadcast %104 : f32 to vector<1x256xf32>
    %477 = arith.mulf %476, %462 : vector<1x256xf32>
    %478 = arith.addf %475, %477 : vector<1x256xf32>
    %c32_i32_106 = arith.constant 32 : i32
    %479 = tpu.dynamic_rotate %478 by %c32_i32_106 dim 1 : vector<1x256xf32>, i32 -> vector<1x256xf32>
    %c32_i32_107 = arith.constant 32 : i32
    %480 = vector.broadcast %c32_i32_107 : i32 to vector<1x256xi32>
    %481 = arith.cmpi sge, %27, %480 : vector<1x256xi32>
    %cst_108 = arith.constant 0.000000e+00 : f32
    %482 = vector.broadcast %cst_108 : f32 to vector<1x256xf32>
    %483 = arith.select %481, %479, %482 : vector<1x256xi1>, vector<1x256xf32>
    %484 = arith.addf %473, %483 : vector<1x256xf32>
    %485 = vector.broadcast %62 : f32 to vector<1x256xf32>
    %486 = arith.mulf %485, %460 : vector<1x256xf32>
    %487 = vector.broadcast %111 : f32 to vector<1x256xf32>
    %488 = arith.mulf %487, %462 : vector<1x256xf32>
    %489 = arith.addf %486, %488 : vector<1x256xf32>
    %c16_i32_109 = arith.constant 16 : i32
    %490 = tpu.dynamic_rotate %489 by %c16_i32_109 dim 1 : vector<1x256xf32>, i32 -> vector<1x256xf32>
    %c16_i32_110 = arith.constant 16 : i32
    %491 = vector.broadcast %c16_i32_110 : i32 to vector<1x256xi32>
    %492 = arith.cmpi sge, %27, %491 : vector<1x256xi32>
    %cst_111 = arith.constant 0.000000e+00 : f32
    %493 = vector.broadcast %cst_111 : f32 to vector<1x256xf32>
    %494 = arith.select %492, %490, %493 : vector<1x256xi1>, vector<1x256xf32>
    %495 = arith.addf %484, %494 : vector<1x256xf32>
    %496 = vector.broadcast %69 : f32 to vector<1x256xf32>
    %497 = arith.mulf %496, %460 : vector<1x256xf32>
    %498 = vector.broadcast %118 : f32 to vector<1x256xf32>
    %499 = arith.mulf %498, %462 : vector<1x256xf32>
    %500 = arith.addf %497, %499 : vector<1x256xf32>
    %501 = arith.addf %495, %500 : vector<1x256xf32>
    %502 = vector.broadcast %76 : f32 to vector<1x256xf32>
    %503 = arith.mulf %502, %460 : vector<1x256xf32>
    %504 = vector.broadcast %125 : f32 to vector<1x256xf32>
    %505 = arith.mulf %504, %462 : vector<1x256xf32>
    %506 = arith.addf %503, %505 : vector<1x256xf32>
    %c240_i32_112 = arith.constant 240 : i32
    %507 = tpu.dynamic_rotate %506 by %c240_i32_112 dim 1 : vector<1x256xf32>, i32 -> vector<1x256xf32>
    %c240_i32_113 = arith.constant 240 : i32
    %508 = vector.broadcast %c240_i32_113 : i32 to vector<1x256xi32>
    %509 = arith.cmpi slt, %27, %508 : vector<1x256xi32>
    %cst_114 = arith.constant 0.000000e+00 : f32
    %510 = vector.broadcast %cst_114 : f32 to vector<1x256xf32>
    %511 = arith.select %509, %507, %510 : vector<1x256xi1>, vector<1x256xf32>
    %512 = arith.addf %501, %511 : vector<1x256xf32>
    %513 = vector.broadcast %83 : f32 to vector<1x256xf32>
    %514 = arith.mulf %513, %460 : vector<1x256xf32>
    %515 = vector.broadcast %132 : f32 to vector<1x256xf32>
    %516 = arith.mulf %515, %462 : vector<1x256xf32>
    %517 = arith.addf %514, %516 : vector<1x256xf32>
    %c224_i32_115 = arith.constant 224 : i32
    %518 = tpu.dynamic_rotate %517 by %c224_i32_115 dim 1 : vector<1x256xf32>, i32 -> vector<1x256xf32>
    %c224_i32_116 = arith.constant 224 : i32
    %519 = vector.broadcast %c224_i32_116 : i32 to vector<1x256xi32>
    %520 = arith.cmpi slt, %27, %519 : vector<1x256xi32>
    %cst_117 = arith.constant 0.000000e+00 : f32
    %521 = vector.broadcast %cst_117 : f32 to vector<1x256xf32>
    %522 = arith.select %520, %518, %521 : vector<1x256xi1>, vector<1x256xf32>
    %523 = arith.addf %512, %522 : vector<1x256xf32>
    %524 = vector.broadcast %90 : f32 to vector<1x256xf32>
    %525 = arith.mulf %524, %460 : vector<1x256xf32>
    %526 = vector.broadcast %139 : f32 to vector<1x256xf32>
    %527 = arith.mulf %526, %462 : vector<1x256xf32>
    %528 = arith.addf %525, %527 : vector<1x256xf32>
    %c208_i32_118 = arith.constant 208 : i32
    %529 = tpu.dynamic_rotate %528 by %c208_i32_118 dim 1 : vector<1x256xf32>, i32 -> vector<1x256xf32>
    %c208_i32_119 = arith.constant 208 : i32
    %530 = vector.broadcast %c208_i32_119 : i32 to vector<1x256xi32>
    %531 = arith.cmpi slt, %27, %530 : vector<1x256xi32>
    %cst_120 = arith.constant 0.000000e+00 : f32
    %532 = vector.broadcast %cst_120 : f32 to vector<1x256xf32>
    %533 = arith.select %531, %529, %532 : vector<1x256xi1>, vector<1x256xf32>
    %534 = arith.addf %523, %533 : vector<1x256xf32>
    %c254_i32 = arith.constant 254 : i32
    %535 = tpu.dynamic_rotate %26 by %c254_i32 dim 1 : vector<1x256xf32>, i32 -> vector<1x256xf32>
    %c254_i32_121 = arith.constant 254 : i32
    %536 = tpu.dynamic_rotate %23 by %c254_i32_121 dim 1 : vector<1x256xf32>, i32 -> vector<1x256xf32>
    %c14_i32 = arith.constant 14 : i32
    %537 = vector.broadcast %c14_i32 : i32 to vector<1x256xi32>
    %538 = arith.cmpi slt, %43, %537 : vector<1x256xi32>
    %cst_122 = arith.constant 0.000000e+00 : f32
    %539 = vector.broadcast %cst_122 : f32 to vector<1x256xf32>
    %540 = arith.select %538, %535, %539 : vector<1x256xi1>, vector<1x256xf32>
    %cst_123 = arith.constant 0.000000e+00 : f32
    %541 = vector.broadcast %cst_123 : f32 to vector<1x256xf32>
    %542 = arith.select %538, %536, %541 : vector<1x256xi1>, vector<1x256xf32>
    %543 = vector.broadcast %49 : f32 to vector<1x256xf32>
    %544 = arith.mulf %543, %540 : vector<1x256xf32>
    %545 = vector.broadcast %98 : f32 to vector<1x256xf32>
    %546 = arith.mulf %545, %542 : vector<1x256xf32>
    %547 = arith.addf %544, %546 : vector<1x256xf32>
    %c48_i32_124 = arith.constant 48 : i32
    %548 = tpu.dynamic_rotate %547 by %c48_i32_124 dim 1 : vector<1x256xf32>, i32 -> vector<1x256xf32>
    %c48_i32_125 = arith.constant 48 : i32
    %549 = vector.broadcast %c48_i32_125 : i32 to vector<1x256xi32>
    %550 = arith.cmpi sge, %27, %549 : vector<1x256xi32>
    %cst_126 = arith.constant 0.000000e+00 : f32
    %551 = vector.broadcast %cst_126 : f32 to vector<1x256xf32>
    %552 = arith.select %550, %548, %551 : vector<1x256xi1>, vector<1x256xf32>
    %553 = arith.addf %534, %552 : vector<1x256xf32>
    %554 = vector.broadcast %56 : f32 to vector<1x256xf32>
    %555 = arith.mulf %554, %540 : vector<1x256xf32>
    %556 = vector.broadcast %105 : f32 to vector<1x256xf32>
    %557 = arith.mulf %556, %542 : vector<1x256xf32>
    %558 = arith.addf %555, %557 : vector<1x256xf32>
    %c32_i32_127 = arith.constant 32 : i32
    %559 = tpu.dynamic_rotate %558 by %c32_i32_127 dim 1 : vector<1x256xf32>, i32 -> vector<1x256xf32>
    %c32_i32_128 = arith.constant 32 : i32
    %560 = vector.broadcast %c32_i32_128 : i32 to vector<1x256xi32>
    %561 = arith.cmpi sge, %27, %560 : vector<1x256xi32>
    %cst_129 = arith.constant 0.000000e+00 : f32
    %562 = vector.broadcast %cst_129 : f32 to vector<1x256xf32>
    %563 = arith.select %561, %559, %562 : vector<1x256xi1>, vector<1x256xf32>
    %564 = arith.addf %553, %563 : vector<1x256xf32>
    %565 = vector.broadcast %63 : f32 to vector<1x256xf32>
    %566 = arith.mulf %565, %540 : vector<1x256xf32>
    %567 = vector.broadcast %112 : f32 to vector<1x256xf32>
    %568 = arith.mulf %567, %542 : vector<1x256xf32>
    %569 = arith.addf %566, %568 : vector<1x256xf32>
    %c16_i32_130 = arith.constant 16 : i32
    %570 = tpu.dynamic_rotate %569 by %c16_i32_130 dim 1 : vector<1x256xf32>, i32 -> vector<1x256xf32>
    %c16_i32_131 = arith.constant 16 : i32
    %571 = vector.broadcast %c16_i32_131 : i32 to vector<1x256xi32>
    %572 = arith.cmpi sge, %27, %571 : vector<1x256xi32>
    %cst_132 = arith.constant 0.000000e+00 : f32
    %573 = vector.broadcast %cst_132 : f32 to vector<1x256xf32>
    %574 = arith.select %572, %570, %573 : vector<1x256xi1>, vector<1x256xf32>
    %575 = arith.addf %564, %574 : vector<1x256xf32>
    %576 = vector.broadcast %70 : f32 to vector<1x256xf32>
    %577 = arith.mulf %576, %540 : vector<1x256xf32>
    %578 = vector.broadcast %119 : f32 to vector<1x256xf32>
    %579 = arith.mulf %578, %542 : vector<1x256xf32>
    %580 = arith.addf %577, %579 : vector<1x256xf32>
    %581 = arith.addf %575, %580 : vector<1x256xf32>
    %582 = vector.broadcast %77 : f32 to vector<1x256xf32>
    %583 = arith.mulf %582, %540 : vector<1x256xf32>
    %584 = vector.broadcast %126 : f32 to vector<1x256xf32>
    %585 = arith.mulf %584, %542 : vector<1x256xf32>
    %586 = arith.addf %583, %585 : vector<1x256xf32>
    %c240_i32_133 = arith.constant 240 : i32
    %587 = tpu.dynamic_rotate %586 by %c240_i32_133 dim 1 : vector<1x256xf32>, i32 -> vector<1x256xf32>
    %c240_i32_134 = arith.constant 240 : i32
    %588 = vector.broadcast %c240_i32_134 : i32 to vector<1x256xi32>
    %589 = arith.cmpi slt, %27, %588 : vector<1x256xi32>
    %cst_135 = arith.constant 0.000000e+00 : f32
    %590 = vector.broadcast %cst_135 : f32 to vector<1x256xf32>
    %591 = arith.select %589, %587, %590 : vector<1x256xi1>, vector<1x256xf32>
    %592 = arith.addf %581, %591 : vector<1x256xf32>
    %593 = vector.broadcast %84 : f32 to vector<1x256xf32>
    %594 = arith.mulf %593, %540 : vector<1x256xf32>
    %595 = vector.broadcast %133 : f32 to vector<1x256xf32>
    %596 = arith.mulf %595, %542 : vector<1x256xf32>
    %597 = arith.addf %594, %596 : vector<1x256xf32>
    %c224_i32_136 = arith.constant 224 : i32
    %598 = tpu.dynamic_rotate %597 by %c224_i32_136 dim 1 : vector<1x256xf32>, i32 -> vector<1x256xf32>
    %c224_i32_137 = arith.constant 224 : i32
    %599 = vector.broadcast %c224_i32_137 : i32 to vector<1x256xi32>
    %600 = arith.cmpi slt, %27, %599 : vector<1x256xi32>
    %cst_138 = arith.constant 0.000000e+00 : f32
    %601 = vector.broadcast %cst_138 : f32 to vector<1x256xf32>
    %602 = arith.select %600, %598, %601 : vector<1x256xi1>, vector<1x256xf32>
    %603 = arith.addf %592, %602 : vector<1x256xf32>
    %604 = vector.broadcast %91 : f32 to vector<1x256xf32>
    %605 = arith.mulf %604, %540 : vector<1x256xf32>
    %606 = vector.broadcast %140 : f32 to vector<1x256xf32>
    %607 = arith.mulf %606, %542 : vector<1x256xf32>
    %608 = arith.addf %605, %607 : vector<1x256xf32>
    %c208_i32_139 = arith.constant 208 : i32
    %609 = tpu.dynamic_rotate %608 by %c208_i32_139 dim 1 : vector<1x256xf32>, i32 -> vector<1x256xf32>
    %c208_i32_140 = arith.constant 208 : i32
    %610 = vector.broadcast %c208_i32_140 : i32 to vector<1x256xi32>
    %611 = arith.cmpi slt, %27, %610 : vector<1x256xi32>
    %cst_141 = arith.constant 0.000000e+00 : f32
    %612 = vector.broadcast %cst_141 : f32 to vector<1x256xf32>
    %613 = arith.select %611, %609, %612 : vector<1x256xi1>, vector<1x256xf32>
    %614 = arith.addf %603, %613 : vector<1x256xf32>
    %c253_i32 = arith.constant 253 : i32
    %615 = tpu.dynamic_rotate %26 by %c253_i32 dim 1 : vector<1x256xf32>, i32 -> vector<1x256xf32>
    %c253_i32_142 = arith.constant 253 : i32
    %616 = tpu.dynamic_rotate %23 by %c253_i32_142 dim 1 : vector<1x256xf32>, i32 -> vector<1x256xf32>
    %c13_i32 = arith.constant 13 : i32
    %617 = vector.broadcast %c13_i32 : i32 to vector<1x256xi32>
    %618 = arith.cmpi slt, %43, %617 : vector<1x256xi32>
    %cst_143 = arith.constant 0.000000e+00 : f32
    %619 = vector.broadcast %cst_143 : f32 to vector<1x256xf32>
    %620 = arith.select %618, %615, %619 : vector<1x256xi1>, vector<1x256xf32>
    %cst_144 = arith.constant 0.000000e+00 : f32
    %621 = vector.broadcast %cst_144 : f32 to vector<1x256xf32>
    %622 = arith.select %618, %616, %621 : vector<1x256xi1>, vector<1x256xf32>
    %623 = vector.broadcast %50 : f32 to vector<1x256xf32>
    %624 = arith.mulf %623, %620 : vector<1x256xf32>
    %625 = vector.broadcast %99 : f32 to vector<1x256xf32>
    %626 = arith.mulf %625, %622 : vector<1x256xf32>
    %627 = arith.addf %624, %626 : vector<1x256xf32>
    %c48_i32_145 = arith.constant 48 : i32
    %628 = tpu.dynamic_rotate %627 by %c48_i32_145 dim 1 : vector<1x256xf32>, i32 -> vector<1x256xf32>
    %c48_i32_146 = arith.constant 48 : i32
    %629 = vector.broadcast %c48_i32_146 : i32 to vector<1x256xi32>
    %630 = arith.cmpi sge, %27, %629 : vector<1x256xi32>
    %cst_147 = arith.constant 0.000000e+00 : f32
    %631 = vector.broadcast %cst_147 : f32 to vector<1x256xf32>
    %632 = arith.select %630, %628, %631 : vector<1x256xi1>, vector<1x256xf32>
    %633 = arith.addf %614, %632 : vector<1x256xf32>
    %634 = vector.broadcast %57 : f32 to vector<1x256xf32>
    %635 = arith.mulf %634, %620 : vector<1x256xf32>
    %636 = vector.broadcast %106 : f32 to vector<1x256xf32>
    %637 = arith.mulf %636, %622 : vector<1x256xf32>
    %638 = arith.addf %635, %637 : vector<1x256xf32>
    %c32_i32_148 = arith.constant 32 : i32
    %639 = tpu.dynamic_rotate %638 by %c32_i32_148 dim 1 : vector<1x256xf32>, i32 -> vector<1x256xf32>
    %c32_i32_149 = arith.constant 32 : i32
    %640 = vector.broadcast %c32_i32_149 : i32 to vector<1x256xi32>
    %641 = arith.cmpi sge, %27, %640 : vector<1x256xi32>
    %cst_150 = arith.constant 0.000000e+00 : f32
    %642 = vector.broadcast %cst_150 : f32 to vector<1x256xf32>
    %643 = arith.select %641, %639, %642 : vector<1x256xi1>, vector<1x256xf32>
    %644 = arith.addf %633, %643 : vector<1x256xf32>
    %645 = vector.broadcast %64 : f32 to vector<1x256xf32>
    %646 = arith.mulf %645, %620 : vector<1x256xf32>
    %647 = vector.broadcast %113 : f32 to vector<1x256xf32>
    %648 = arith.mulf %647, %622 : vector<1x256xf32>
    %649 = arith.addf %646, %648 : vector<1x256xf32>
    %c16_i32_151 = arith.constant 16 : i32
    %650 = tpu.dynamic_rotate %649 by %c16_i32_151 dim 1 : vector<1x256xf32>, i32 -> vector<1x256xf32>
    %c16_i32_152 = arith.constant 16 : i32
    %651 = vector.broadcast %c16_i32_152 : i32 to vector<1x256xi32>
    %652 = arith.cmpi sge, %27, %651 : vector<1x256xi32>
    %cst_153 = arith.constant 0.000000e+00 : f32
    %653 = vector.broadcast %cst_153 : f32 to vector<1x256xf32>
    %654 = arith.select %652, %650, %653 : vector<1x256xi1>, vector<1x256xf32>
    %655 = arith.addf %644, %654 : vector<1x256xf32>
    %656 = vector.broadcast %71 : f32 to vector<1x256xf32>
    %657 = arith.mulf %656, %620 : vector<1x256xf32>
    %658 = vector.broadcast %120 : f32 to vector<1x256xf32>
    %659 = arith.mulf %658, %622 : vector<1x256xf32>
    %660 = arith.addf %657, %659 : vector<1x256xf32>
    %661 = arith.addf %655, %660 : vector<1x256xf32>
    %662 = vector.broadcast %78 : f32 to vector<1x256xf32>
    %663 = arith.mulf %662, %620 : vector<1x256xf32>
    %664 = vector.broadcast %127 : f32 to vector<1x256xf32>
    %665 = arith.mulf %664, %622 : vector<1x256xf32>
    %666 = arith.addf %663, %665 : vector<1x256xf32>
    %c240_i32_154 = arith.constant 240 : i32
    %667 = tpu.dynamic_rotate %666 by %c240_i32_154 dim 1 : vector<1x256xf32>, i32 -> vector<1x256xf32>
    %c240_i32_155 = arith.constant 240 : i32
    %668 = vector.broadcast %c240_i32_155 : i32 to vector<1x256xi32>
    %669 = arith.cmpi slt, %27, %668 : vector<1x256xi32>
    %cst_156 = arith.constant 0.000000e+00 : f32
    %670 = vector.broadcast %cst_156 : f32 to vector<1x256xf32>
    %671 = arith.select %669, %667, %670 : vector<1x256xi1>, vector<1x256xf32>
    %672 = arith.addf %661, %671 : vector<1x256xf32>
    %673 = vector.broadcast %85 : f32 to vector<1x256xf32>
    %674 = arith.mulf %673, %620 : vector<1x256xf32>
    %675 = vector.broadcast %134 : f32 to vector<1x256xf32>
    %676 = arith.mulf %675, %622 : vector<1x256xf32>
    %677 = arith.addf %674, %676 : vector<1x256xf32>
    %c224_i32_157 = arith.constant 224 : i32
    %678 = tpu.dynamic_rotate %677 by %c224_i32_157 dim 1 : vector<1x256xf32>, i32 -> vector<1x256xf32>
    %c224_i32_158 = arith.constant 224 : i32
    %679 = vector.broadcast %c224_i32_158 : i32 to vector<1x256xi32>
    %680 = arith.cmpi slt, %27, %679 : vector<1x256xi32>
    %cst_159 = arith.constant 0.000000e+00 : f32
    %681 = vector.broadcast %cst_159 : f32 to vector<1x256xf32>
    %682 = arith.select %680, %678, %681 : vector<1x256xi1>, vector<1x256xf32>
    %683 = arith.addf %672, %682 : vector<1x256xf32>
    %684 = vector.broadcast %92 : f32 to vector<1x256xf32>
    %685 = arith.mulf %684, %620 : vector<1x256xf32>
    %686 = vector.broadcast %141 : f32 to vector<1x256xf32>
    %687 = arith.mulf %686, %622 : vector<1x256xf32>
    %688 = arith.addf %685, %687 : vector<1x256xf32>
    %c208_i32_160 = arith.constant 208 : i32
    %689 = tpu.dynamic_rotate %688 by %c208_i32_160 dim 1 : vector<1x256xf32>, i32 -> vector<1x256xf32>
    %c208_i32_161 = arith.constant 208 : i32
    %690 = vector.broadcast %c208_i32_161 : i32 to vector<1x256xi32>
    %691 = arith.cmpi slt, %27, %690 : vector<1x256xi32>
    %cst_162 = arith.constant 0.000000e+00 : f32
    %692 = vector.broadcast %cst_162 : f32 to vector<1x256xf32>
    %693 = arith.select %691, %689, %692 : vector<1x256xi1>, vector<1x256xf32>
    %694 = arith.addf %683, %693 : vector<1x256xf32>
    %695 = arith.negf %694 : vector<1x256xf32>
    %696 = math.exp %695 : vector<1x256xf32>
    %cst_163 = arith.constant 1.000000e+00 : f32
    %697 = vector.broadcast %cst_163 : f32 to vector<1x256xf32>
    %698 = arith.addf %697, %696 : vector<1x256xf32>
    %699 = arith.divf %697, %698 : vector<1x256xf32>
    %700 = vector.shape_cast %699 : vector<1x256xf32> to vector<1x1x256xf32>
    %701 = vector.broadcast %700 : vector<1x1x256xf32> to vector<1x32x256xf32>
    %702 = arith.mulf %22, %701 : vector<1x32x256xf32>
    %c0_164 = arith.constant 0 : index
    %c0_165 = arith.constant 0 : index
    %c0_166 = arith.constant 0 : index
    %703 = vector.load %arg5[%c0_164, %c0_165, %c0_166] : memref<1x32x256xf32, #tpu.memory_space<vmem>>, vector<1x32x256xf32>
    tpu.vector_store %arg5[%c0_164, %c0_165, %c0_166], %702 {strides = array<i32>} : memref<1x32x256xf32, #tpu.memory_space<vmem>>, vector<1x32x256xf32>,
    return
  }
  func.func @transform_0(%arg0: i32) -> (i32, i32, i32) {
    %c0_i32 = arith.constant 0 : i32
    %c0_i32_0 = arith.constant 0 : i32
    %c0_i32_1 = arith.constant 0 : i32
    return %arg0, %c0_i32, %c0_i32_0 : i32, i32, i32
  }
  func.func @transform_1(%arg0: i32) -> (i32, i32) {
    %c0_i32 = arith.constant 0 : i32
    %c0_i32_0 = arith.constant 0 : i32
    %c0_i32_1 = arith.constant 0 : i32
    return %c0_i32, %c0_i32_0 : i32, i32
  }
  func.func @transform_2(%arg0: i32) -> (i32, i32) {
    %c0_i32 = arith.constant 0 : i32
    %c0_i32_0 = arith.constant 0 : i32
    %c0_i32_1 = arith.constant 0 : i32
    return %c0_i32, %c0_i32_0 : i32, i32
  }
  func.func @transform_3(%arg0: i32) -> i32 {
    %c0_i32 = arith.constant 0 : i32
    %c0_i32_0 = arith.constant 0 : i32
    return %c0_i32 : i32
  }
  func.func @transform_4(%arg0: i32) -> (i32, i32, i32) {
    %c0_i32 = arith.constant 0 : i32
    %c0_i32_0 = arith.constant 0 : i32
    %c0_i32_1 = arith.constant 0 : i32
    return %arg0, %c0_i32, %c0_i32_0 : i32, i32, i32
  }
}

</mosaic_0001>

<llo_original>
// kernel: cbam_pallas.1
$region0: #{cbam_pallas.1}
  #allocation0 [shape = 'u32[]', space=smem, size = 0x4, offset = 0x4, fixed_abs, tag = 'smem constant byte address 0x4 - core index']
  #allocation1 [shape = 'u32[144,128]{1,0:T(1,128)}', space=vmem, size = 0x12000, scoped, tag = 'internal scratch']
  %s0 = inlined_call_operand.vmem [shape: f32[2,32,256], index: 0, kind: input, shape index: {}]
  %s1 = inlined_call_operand.vmem [shape: f32[32,2], index: 1, kind: input, shape index: {}]
  %s2 = inlined_call_operand.vmem [shape: f32[2,32], index: 2, kind: input, shape index: {}]
  %s3 = inlined_call_operand.vmem [shape: f32[98], index: 3, kind: input, shape index: {}]
  %s4 = inlined_call_operand.vmem [shape: f32[2,32,256], index: 4, kind: output, shape index: {}]
  %s5 = sld [smem:[#allocation0]]
  $region53: #{cbam_pallas.1} parent=0
    _
  %s7 = ssub.s32 1, %s5
  %s8 = scalar_select 0, %s7, %s5
  $region1: #{cbam_pallas.1} parent=0
    #allocation2 [shape = 'u8[512]{0}', space=smem, size = 0x200, scoped, tag = 'input window, operand 3, single buffered']
    #allocation3 [shape = 's32[2]{0}', space=sflag, size = 0x8, scoped, tag = 'scoped memory for cbam_pallas.1']
    %9 = vsyncpa [#allocation3], 0
    loop: start=0, step=1, limit=4
    $region2: #{cbam_pallas.1} parent=1 // loop_pre_header
      _
    $region3: #{cbam_pallas.1} parent=1 // loop_header
      %s11 = sphi 0, %s15
      %p12 = scmp.ge.s32.totalorder %s11, 4
      %s21 = sphi 0, %s23
      %s24 = sphi 0, %s21
      %s25 = sphi 0, %s24
      %s41 = sphi 0, %s25
      %s45 = sphi 0, %s45
      %s47 = sphi 0, %s45
      %s48 = sphi 0, %s47
      %s62 = sphi 0, %s48
      %s66 = sphi 0, %s66
      %s68 = sphi 0, %s66
      %s69 = sphi 0, %s68
      %s83 = sphi 0, %s69
      %s87 = sphi 0, %s87
      %s89 = sphi 0, %s87
      %s90 = sphi 0, %s89
      %s104 = sphi 0, %s90
      %s110 = sphi 0, %s112
      %s113 = sphi 0, %s110
      %s114 = sphi 0, %s113
      %s130 = sphi 0, %s114
    $region4: #{cbam_pallas.1} parent=1 // loop_header_branch
      %14 = sbr.rel (%p12) target = $region8
    $region5: #{cbam_pallas.1} parent=1 // loop_body
      %s16 = ssub.s32 %s11, 1
      %s17 = ssub.s32 %s11, 2
      %s18 = sadd.s32 %s11, 1
      %s19 = ssub.s32 %s11, %s18
      %p20 = scmp.eq.s32.totalorder %s19, 0
      %s22 = sadd.s32 %s21, 1
      %s23 = scalar_select %p20, %s21, %s22
      %p26 = pneg %p20
      %p27 = scmp.eq.s32.totalorder %s11, 1
      %p28 = por %p26, %p27
      %p29 = scmp.ne.s32.totalorder %s21, %s24
      %p30 = scmp.eq.s32.totalorder %s11, 0
      %p31 = por %p29, %p30
      %p32 = scmp.ne.s32.totalorder %s21, %s24
      %p33 = scmp.eq.s32.totalorder %s16, 1
      %p34 = por %p32, %p33
      %p35 = scmp.ne.s32.totalorder %s24, %s25
      %p36 = scmp.eq.s32.totalorder %s16, 0
      %p37 = por %p35, %p36
      %p38 = scmp.ne.s32.totalorder %s24, %s25
      %p39 = scmp.eq.s32.totalorder %s17, 1
      %p40 = por %p38, %p39
      %p42 = scmp.ne.s32.totalorder %s25, %s41
      %p43 = scmp.eq.s32.totalorder %s17, 0
      %p44 = por %p42, %p43
      %s46 = sadd.s32 %s45, 1
      %p49 = scmp.eq.s32.totalorder %s11, 1
      %p50 = scmp.ne.s32.totalorder %s45, %s47
      %p51 = scmp.eq.s32.totalorder %s11, 0
      %p52 = por %p50, %p51
      %p53 = scmp.ne.s32.totalorder %s45, %s47
      %p54 = scmp.eq.s32.totalorder %s16, 1
      %p55 = por %p53, %p54
      %p56 = scmp.ne.s32.totalorder %s47, %s48
      %p57 = scmp.eq.s32.totalorder %s16, 0
      %p58 = por %p56, %p57
      %p59 = scmp.ne.s32.totalorder %s47, %s48
      %p60 = scmp.eq.s32.totalorder %s17, 1
      %p61 = por %p59, %p60
      %p63 = scmp.ne.s32.totalorder %s48, %s62
      %p64 = scmp.eq.s32.totalorder %s17, 0
      %p65 = por %p63, %p64
      %s67 = sadd.s32 %s66, 1
      %p70 = scmp.eq.s32.totalorder %s11, 1
      %p71 = scmp.ne.s32.totalorder %s66, %s68
      %p72 = scmp.eq.s32.totalorder %s11, 0
      %p73 = por %p71, %p72
      %p74 = scmp.ne.s32.totalorder %s66, %s68
      %p75 = scmp.eq.s32.totalorder %s16, 1
      %p76 = por %p74, %p75
      %p77 = scmp.ne.s32.totalorder %s68, %s69
      %p78 = scmp.eq.s32.totalorder %s16, 0
      %p79 = por %p77, %p78
      %p80 = scmp.ne.s32.totalorder %s68, %s69
      %p81 = scmp.eq.s32.totalorder %s17, 1
      %p82 = por %p80, %p81
      %p84 = scmp.ne.s32.totalorder %s69, %s83
      %p85 = scmp.eq.s32.totalorder %s17, 0
      %p86 = por %p84, %p85
      %s88 = sadd.s32 %s87, 1
      %p91 = scmp.eq.s32.totalorder %s11, 1
      %p92 = scmp.ne.s32.totalorder %s87, %s89
      %p93 = scmp.eq.s32.totalorder %s11, 0
      %p94 = por %p92, %p93
      %p95 = scmp.ne.s32.totalorder %s87, %s89
      %p96 = scmp.eq.s32.totalorder %s16, 1
      %p97 = por %p95, %p96
      %p98 = scmp.ne.s32.totalorder %s89, %s90
      %p99 = scmp.eq.s32.totalorder %s16, 0
      %p100 = por %p98, %p99
      %p101 = scmp.ne.s32.totalorder %s89, %s90
      %p102 = scmp.eq.s32.totalorder %s17, 1
      %p103 = por %p101, %p102
      %p105 = scmp.ne.s32.totalorder %s90, %s104
      %p106 = scmp.eq.s32.totalorder %s17, 0
      %p107 = por %p105, %p106
      %s108 = ssub.s32 %s11, %s18
      %p109 = scmp.eq.s32.totalorder %s108, 0
      %s111 = sadd.s32 %s110, 1
      %s112 = scalar_select %p109, %s110, %s111
      %p115 = pneg %p109
      %p116 = scmp.eq.s32.totalorder %s11, 1
      %p117 = por %p115, %p116
      %p118 = scmp.ne.s32.totalorder %s110, %s113
      %p119 = scmp.eq.s32.totalorder %s11, 0
      %p120 = por %p118, %p119
      %p121 = scmp.ne.s32.totalorder %s110, %s113
      %p122 = scmp.eq.s32.totalorder %s16, 1
      %p123 = por %p121, %p122
      %p124 = scmp.ne.s32.totalorder %s113, %s114
      %p125 = scmp.eq.s32.totalorder %s16, 0
      %p126 = por %p124, %p125
      %p127 = scmp.ne.s32.totalorder %s113, %s114
      %p128 = scmp.eq.s32.totalorder %s17, 1
      %p129 = por %p127, %p128
      %p131 = scmp.ne.s32.totalorder %s114, %s130
      %p132 = scmp.eq.s32.totalorder %s17, 0
      %p133 = por %p131, %p132
      %p134 = scmp.le.s32.totalorder 1, %s11
      %p135 = scmp.lt.s32.totalorder %s11, 3
      %p136 = pnand %p134, %p135
      %p137 = pneg %p136
      // Predicated region
      $region9: #{cbam_pallas.1} parent=5 // pred_check
        _
      $region10: #{cbam_pallas.1} parent=5 // pred_check_branch
        %139 = sbr.rel (%p136) target = $region12
      $region11: #{cbam_pallas.1} parent=5 // pred_region
        %s140 = ssub.s32 %s11, 1
        // Predicated region
        $region13: #{cbam_pallas.1} parent=11 // pred_check
          %p141 = pneg %p58
        $region14: #{cbam_pallas.1} parent=11 // pred_check_branch
          %143 = sbr.rel (%p141) target = $region16
        $region15: #{cbam_pallas.1} parent=11 // pred_region
          _
        $region16: #{cbam_pallas.1} parent=11 // pred_fallthru
          _
        // Predicated region
        $region17: #{cbam_pallas.1} parent=11 // pred_check
          %p144 = pneg %p79
        $region18: #{cbam_pallas.1} parent=11 // pred_check_branch
          %146 = sbr.rel (%p144) target = $region20
        $region19: #{cbam_pallas.1} parent=11 // pred_region
          _
        $region20: #{cbam_pallas.1} parent=11 // pred_fallthru
          _
        // Predicated region
        $region21: #{cbam_pallas.1} parent=11 // pred_check
          %p147 = pneg %p100
        $region22: #{cbam_pallas.1} parent=11 // pred_check_branch
          %149 = sbr.rel (%p147) target = $region24
        $region23: #{cbam_pallas.1} parent=11 // pred_region
          %s151 = ssub.s32 16, 16
          %152 = vsyncadd [#allocation3], %s151
          %s154 = sshll.u32 %s3, 4
          %s155 = int_to_ptr.vmem [resolvable:$true] %s154
          %157 = dma.vmem_to_smem %s155, 16, [#allocation2], [#allocation3]
        $region24: #{cbam_pallas.1} parent=11 // pred_fallthru
          _
      $region12: #{cbam_pallas.1} parent=5 // pred_fallthru
        _
      %p158 = scmp.lt.s32.totalorder %s11, 2
      // Predicated region
      $region25: #{cbam_pallas.1} parent=5 // pred_check
        %p159 = pneg %p158
      $region26: #{cbam_pallas.1} parent=5 // pred_check_branch
        %161 = sbr.rel (%p159) target = $region28
      $region27: #{cbam_pallas.1} parent=5 // pred_region
        // Predicated region
        $region29: #{cbam_pallas.1} parent=27 // pred_check
          %p162 = pneg %p31
        $region30: #{cbam_pallas.1} parent=27 // pred_check_branch
          %164 = sbr.rel (%p162) target = $region32
        $region31: #{cbam_pallas.1} parent=27 // pred_region
          %p165 = scmp.lt.s32.totalorder %s11, 1
          %s166 = scalar_select %p165, %s11, 1
          %s167 = smul.addr %s166, 8
          %s168 = smul.addr %s167, 8
          %s169 = scalar_lea.vmem %s0, %s168
        $region32: #{cbam_pallas.1} parent=27 // pred_fallthru
          _
      $region28: #{cbam_pallas.1} parent=5 // pred_fallthru
        _
      %p170 = scmp.le.s32.totalorder 1, %s11
      %p171 = scmp.lt.s32.totalorder %s11, 3
      %p172 = pnand %p170, %p171
      %p173 = pneg %p172
      // Predicated region
      $region33: #{cbam_pallas.1} parent=5 // pred_check
        _
      $region34: #{cbam_pallas.1} parent=5 // pred_check_branch
        %175 = sbr.rel (%p172) target = $region36
      $region35: #{cbam_pallas.1} parent=5 // pred_region
        %s176 = ssub.s32 %s11, 1
        // Predicated region
        $region37: #{cbam_pallas.1} parent=35 // pred_check
          %p177 = pneg %p100
        $region38: #{cbam_pallas.1} parent=35 // pred_check_branch
          %179 = sbr.rel (%p177) target = $region40
        $region39: #{cbam_pallas.1} parent=35 // pred_region
          %180 = dma.done [#allocation3], 16
        $region40: #{cbam_pallas.1} parent=35 // pred_fallthru
          _
        %181 = sfence
        %p182 = scmp.lt.s32.totalorder %s16, 1
        %s183 = scalar_select %p182, %s16, 1
        %s184 = smul.addr %s183, 8
        %s185 = smul.addr %s184, 8
        %s186 = scalar_lea.vmem %s0, %s185
        %p187 = pneg %p37
        %p188 = pneg %p34
        %p189 = pneg %p58
        %p190 = pneg %p55
        %p191 = pneg %p79
        %p192 = pneg %p76
        %p193 = pneg %p100
        %p194 = pneg %p97
        %p195 = pneg %p126
        %p196 = pneg %p123
        %p197 = scmp.lt.s32.totalorder %s16, 1
        %s198 = scalar_select %p197, %s16, 1
        %s199 = smul.addr %s198, 8
        %s200 = smul.addr %s199, 8
        %s201 = scalar_lea.vmem %s4, %s200
        %p202 = scmp.lt.s32.totalorder %s16, 1
        %s203 = scalar_select %p202, %s16, 1
        %s204 = smul.addr %s203, 8
        %s205 = smul.addr %s204, 8
        %s206 = scalar_lea.vmem %s0, %s205
        %p207 = scmp.lt.s32.totalorder %s16, 1
        %s208 = scalar_select %p207, %s16, 1
        %s209 = smul.addr %s208, 8
        %s210 = smul.addr %s209, 8
        %s211 = scalar_lea.vmem %s4, %s210
        %v212 = vld [vmem:[%s206] sm:$0xff]
        %v213 = vld [vmem:[%s206 + $0x8] sm:$0xff]
        %v214 = vld [vmem:[%s206 + $0x10] sm:$0xff]
        %v215 = vld [vmem:[%s206 + $0x18] sm:$0xff]
        %v216 = vld [vmem:[%s206 + $0x20] sm:$0xff]
        %v217 = vld [vmem:[%s206 + $0x28] sm:$0xff]
        %v218 = vld [vmem:[%s206 + $0x30] sm:$0xff]
        %v219 = vld [vmem:[%s206 + $0x38] sm:$0xff]
        %v220 = vmax.f32 %v212, %v213
        %221 = vmax.xlane.f32.xlu0 %v220
        %v222 = vpop.xlane.xlu0 %221
        %v223 = vmax.f32 %v214, %v215
        %224 = vmax.xlane.f32.xlu0 %v223
        %v225 = vpop.xlane.xlu0 %224
        %v226 = vmax.f32 %v216, %v217
        %227 = vmax.xlane.f32.xlu0 %v226
        %v228 = vpop.xlane.xlu0 %227
        %v229 = vmax.f32 %v218, %v219
        %230 = vmax.xlane.f32.xlu0 %v229
        %v231 = vpop.xlane.xlu0 %230
        %v232 = vadd.f32 %v212, %v213
        %233 = vadd.xlane.f32.xlu0 %v232
        %v234 = vpop.xlane.xlu0 %233
        %v235 = vadd.f32 %v214, %v215
        %236 = vadd.xlane.f32.xlu0 %v235
        %v237 = vpop.xlane.xlu0 %236
        %v238 = vadd.f32 %v216, %v217
        %239 = vadd.xlane.f32.xlu0 %v238
        %v240 = vpop.xlane.xlu0 %239
        %v241 = vadd.f32 %v218, %v219
        %242 = vadd.xlane.f32.xlu0 %v241
        %v243 = vpop.xlane.xlu0 %242
        %v244 = vmul.f32 %v234, 0.00390625
        %v245 = vmul.f32 %v237, 0.00390625
        %v246 = vmul.f32 %v240, 0.00390625
        %v247 = vmul.f32 %v243, 0.00390625
        %v252 = vlaneseq
        %v253 = vand.u32 %v252, 127
        %v254 = vlaneseq
        %v255 = vshrl.u32 %v254, 7
        %v256 = vsub.s32 %v253, %v255
        %v257 = vrot.slane %v222, %v256
        %v258 = vadd.s32 %v253, 4294967288
        %v259 = vlaneseq
        %v260 = vshrl.u32 %v259, 7
        %v261 = vsub.s32 %v258, %v260
        %v262 = vrot.slane %v225, %v261
        %vm263 = vcmask 130112
        %v264 = vsel %vm263, %v262, %v257
        %v265 = vadd.s32 %v253, 4294967280
        %v266 = vlaneseq
        %v267 = vshrl.u32 %v266, 7
        %v268 = vsub.s32 %v265, %v267
        %v269 = vrot.slane %v228, %v268
        %vm270 = vcmask 195712
        %v271 = vsel %vm270, %v269, %v264
        %v272 = vadd.s32 %v253, 4294967272
        %v273 = vlaneseq
        %v274 = vshrl.u32 %v273, 7
        %v275 = vsub.s32 %v272, %v274
        %v276 = vrot.slane %v231, %v275
        %vm277 = vcmask 261312
        %v278 = vsel %vm277, %v276, %v271
        %v284 = vlaneseq
        %v285 = vshrl.u32 %v284, 7
        %v286 = vsub.s32 %v253, %v285
        %v287 = vrot.slane %v244, %v286
        %v288 = vlaneseq
        %v289 = vshrl.u32 %v288, 7
        %v290 = vsub.s32 %v258, %v289
        %v291 = vrot.slane %v245, %v290
        %v292 = vsel %vm263, %v291, %v287
        %v293 = vlaneseq
        %v294 = vshrl.u32 %v293, 7
        %v295 = vsub.s32 %v265, %v294
        %v296 = vrot.slane %v246, %v295
        %v297 = vsel %vm270, %v296, %v292
        %v298 = vlaneseq
        %v299 = vshrl.u32 %v298, 7
        %v300 = vsub.s32 %v272, %v299
        %v301 = vrot.slane %v247, %v300
        %v302 = vsel %vm277, %v301, %v297
        %vm304 = vcmask 1040384
        %v305 = vsel %vm304, %v278, %v302
        %v306 = vld [vmem:[%s1] sm:$0xff]
        %v307 = vld [vmem:[%s1 + $0x8] sm:$0xff]
        %v308 = vld [vmem:[%s1 + $0x10] sm:$0xff]
        %v309 = vld [vmem:[%s1 + $0x18] sm:$0xff]
        %vm310 = vcmask 261120
        %v312 = vsel %vm310, %v305, 0
        %314 = vmatprep.subr.mxu0 0.0
        %315 = vmatpush1.msra.mxu0 %v306
        %316 = vmatprep.subr.mxu0 0.0
        %317 = vmatpush1.msra.mxu0 %v307
        %318 = vmatprep.subr.mxu0 0.0
        %319 = vmatpush1.msra.mxu0 %v308
        %320 = vmatprep.subr.mxu0 0.0
        %321 = vmatpush1.msra.mxu0 %v309
        %322 = vmatprep.subr.mxu0 0.0
        %323 = vmatpush1.msra.mxu0 0.0
        %324 = vmatprep.subr.mxu0 0.0
        %325 = vmatpush1.msra.mxu0 0.0
        %326 = vmatprep.subr.mxu0 0.0
        %327 = vmatpush1.msra.mxu0 0.0
        %328 = vmatprep.subr.mxu0 0.0
        %329 = vmatpush1.msra.mxu0 0.0
        %330 = vmatprep.subr.mxu0 0.0
        %331 = vmatpush1.msra.mxu0 0.0
        %332 = vmatprep.subr.mxu0 0.0
        %333 = vmatpush1.msra.mxu0 0.0
        %334 = vmatprep.subr.mxu0 0.0
        %335 = vmatpush1.msra.mxu0 0.0
        %336 = vmatprep.subr.mxu0 0.0
        %337 = vmatpush1.msra.mxu0 0.0
        %338 = vmatprep.subr.mxu0 0.0
        %339 = vmatpush1.msra.mxu0 0.0
        %340 = vmatprep.subr.mxu0 0.0
        %341 = vmatpush1.msra.mxu0 0.0
        %342 = vmatprep.subr.mxu0 0.0
        %343 = vmatpush1.msra.mxu0 0.0
        %344 = vmatprep.subr.mxu0 0.0
        %345 = vmatpush1.msra.mxu0 0.0
        %346 = vmatprep.subr.mxu0 0.0
        %347 = vmatpush1.msra.mxu0 0.0
        %348 = vmatprep.subr.mxu0 0.0
        %349 = vmatpush1.msra.mxu0 0.0
        %350 = vmatprep.subr.mxu0 0.0
        %351 = vmatpush1.msra.mxu0 0.0
        %352 = vmatprep.subr.mxu0 0.0
        %353 = vmatpush1.msra.mxu0 0.0
        %354 = vmatprep.subr.mxu0 0.0
        %355 = vmatpush1.msra.mxu0 0.0
        %356 = vmatprep.subr.mxu0 0.0
        %357 = vmatpush1.msra.mxu0 0.0
        %358 = vmatprep.subr.mxu0 0.0
        %359 = vmatpush1.msra.mxu0 0.0
        %360 = vmatprep.subr.mxu0 0.0
        %361 = vmatpush1.msra.mxu0 0.0
        %362 = vmatprep.subr.mxu0 0.0
        %363 = vmatpush1.msra.mxu0 0.0
        %364 = vmatprep.subr.mxu0 0.0
        %365 = vmatpush1.msra.mxu0 0.0
        %366 = vmatprep.subr.mxu0 0.0
        %367 = vmatpush1.msra.mxu0 0.0
        %368 = vmatprep.subr.mxu0 0.0
        %369 = vmatpush1.msra.mxu0 0.0
        %370 = vmatprep.subr.mxu0 0.0
        %371 = vmatpush1.msra.mxu0 0.0
        %372 = vmatprep.subr.mxu0 0.0
        %373 = vmatpush1.msra.mxu0 0.0
        %374 = vmatprep.subr.mxu0 0.0
        %375 = vmatpush1.msra.mxu0 0.0
        %376 = vmatprep.subr.mxu0 0.0
        %377 = vmatpush1.msra.mxu0 0.0
        %378 = vmatprep.mubr.f32.mxu0 0.0
        %379 = vmatmul.mubr.f32.gmra.mrb[0].mxu0 %v312
        %v380 = vpop.f32.mrb[0].mxu0
        %v381 = vadd.f32 0.0, %v380
        %v382 = vpop.f32.mrb[0].mxu0
        %383 = vdwg.mxu0
        %v384 = vmax.f32 %v381, 0.0
        %v385 = vld [vmem:[%s2] sm:$0x3]
        %vm386 = vcmask 15360
        %v388 = vsel %vm386, %v384, 0
        %vm390 = vcmask 1041408
        %v392 = vsel %vm390, %v385, 0
        %394 = vmatprep.subr.mxu0 0.0
        %395 = vmatpush1.msra.mxu0 %v392
        %396 = vmatprep.subr.mxu0 0.0
        %397 = vmatpush1.msra.mxu0 0.0
        %398 = vmatprep.subr.mxu0 0.0
        %399 = vmatpush1.msra.mxu0 0.0
        %400 = vmatprep.subr.mxu0 0.0
        %401 = vmatpush1.msra.mxu0 0.0
        %402 = vmatprep.subr.mxu0 0.0
        %403 = vmatpush1.msra.mxu0 0.0
        %404 = vmatprep.subr.mxu0 0.0
        %405 = vmatpush1.msra.mxu0 0.0
        %406 = vmatprep.subr.mxu0 0.0
        %407 = vmatpush1.msra.mxu0 0.0
        %408 = vmatprep.subr.mxu0 0.0
        %409 = vmatpush1.msra.mxu0 0.0
        %410 = vmatprep.subr.mxu0 0.0
        %411 = vmatpush1.msra.mxu0 0.0
        %412 = vmatprep.subr.mxu0 0.0
        %413 = vmatpush1.msra.mxu0 0.0
        %414 = vmatprep.subr.mxu0 0.0
        %415 = vmatpush1.msra.mxu0 0.0
        %416 = vmatprep.subr.mxu0 0.0
        %417 = vmatpush1.msra.mxu0 0.0
        %418 = vmatprep.subr.mxu0 0.0
        %419 = vmatpush1.msra.mxu0 0.0
        %420 = vmatprep.subr.mxu0 0.0
        %421 = vmatpush1.msra.mxu0 0.0
        %422 = vmatprep.subr.mxu0 0.0
        %423 = vmatpush1.msra.mxu0 0.0
        %424 = vmatprep.subr.mxu0 0.0
        %425 = vmatpush1.msra.mxu0 0.0
        %426 = vmatprep.subr.mxu0 0.0
        %427 = vmatpush1.msra.mxu0 0.0
        %428 = vmatprep.subr.mxu0 0.0
        %429 = vmatpush1.msra.mxu0 0.0
        %430 = vmatprep.subr.mxu0 0.0
        %431 = vmatpush1.msra.mxu0 0.0
        %432 = vmatprep.subr.mxu0 0.0
        %433 = vmatpush1.msra.mxu0 0.0
        %434 = vmatprep.subr.mxu0 0.0
        %435 = vmatpush1.msra.mxu0 0.0
        %436 = vmatprep.subr.mxu0 0.0
        %437 = vmatpush1.msra.mxu0 0.0
        %438 = vmatprep.subr.mxu0 0.0
        %439 = vmatpush1.msra.mxu0 0.0
        %440 = vmatprep.subr.mxu0 0.0
        %441 = vmatpush1.msra.mxu0 0.0
        %442 = vmatprep.subr.mxu0 0.0
        %443 = vmatpush1.msra.mxu0 0.0
        %444 = vmatprep.subr.mxu0 0.0
        %445 = vmatpush1.msra.mxu0 0.0
        %446 = vmatprep.subr.mxu0 0.0
        %447 = vmatpush1.msra.mxu0 0.0
        %448 = vmatprep.subr.mxu0 0.0
        %449 = vmatpush1.msra.mxu0 0.0
        %450 = vmatprep.subr.mxu0 0.0
        %451 = vmatpush1.msra.mxu0 0.0
        %452 = vmatprep.subr.mxu0 0.0
        %453 = vmatpush1.msra.mxu0 0.0
        %454 = vmatprep.subr.mxu0 0.0
        %455 = vmatpush1.msra.mxu0 0.0
        %456 = vmatprep.subr.mxu0 0.0
        %457 = vmatpush1.msra.mxu0 0.0
        %458 = vmatprep.mubr.f32.mxu0 0.0
        %459 = vmatmul.mubr.f32.gmra.mrb[0].mxu0 %v388
        %v460 = vpop.f32.mrb[0].mxu0
        %v461 = vadd.f32 0.0, %v460
        %v462 = vpop.f32.mrb[0].mxu0
        %463 = vdwg.mxu0
        %v465 = vrot.slane %v461, 1
        %v467 = vadd.f32 %v461, %v465
        %v468 = vxor.u32 %v467, 2147483648
        %v469 = vmul.f32 %v468, 1.442695
        %v470 = vpow.pop %v469
        %v471 = vadd.f32 %v470, 1.0
        %v472 = vrcp.pop %v471
        %v473 = vmul.f32 1.0, %v472
        %v474 = vlaneseq
        %v475 = vshrl.u32 %v474, 7
        %v476 = vsub.s32 0, %v475
        %v477 = vrot.slane %v473, %v476
        %479 = vbcast.lane.b32.xlu0 %v477, 256
        %v480 = vpop.permute.xlu0 %479
        %s482 = sor.u32 256, 8
        %483 = vbcast.lane.b32.xlu0 %v477, %s482
        %v484 = vpop.permute.xlu0 %483
        %s486 = sor.u32 256, 16
        %487 = vbcast.lane.b32.xlu0 %v477, %s486
        %v488 = vpop.permute.xlu0 %487
        %s490 = sor.u32 256, 24
        %491 = vbcast.lane.b32.xlu0 %v477, %s490
        %v492 = vpop.permute.xlu0 %491
        %v493 = vmul.f32 %v212, %v480
        %v494 = vmul.f32 %v213, %v480
        %v495 = vmul.f32 %v214, %v484
        %v496 = vmul.f32 %v215, %v484
        %v497 = vmul.f32 %v216, %v488
        %v498 = vmul.f32 %v217, %v488
        %v499 = vmul.f32 %v218, %v492
        %v500 = vmul.f32 %v219, %v492
        %v501 = vmax.f32 %v493, %v497
        %v502 = vmax.f32 %v495, %v499
        %v503 = vmax.f32 %v501, %v502
        %v504 = vrot.slane %v503, 4
        %v505 = vmax.f32 %v503, %v504
        %v506 = vrot.slane %v505, 2
        %v507 = vmax.f32 %v505, %v506
        %v508 = vrot.slane %v507, 1
        %v509 = vmax.f32 %v507, %v508
        %v510 = vmax.f32 %v494, %v498
        %v511 = vmax.f32 %v496, %v500
        %v512 = vmax.f32 %v510, %v511
        %v513 = vrot.slane %v512, 4
        %v514 = vmax.f32 %v512, %v513
        %v515 = vrot.slane %v514, 2
        %v516 = vmax.f32 %v514, %v515
        %v517 = vrot.slane %v516, 1
        %v518 = vmax.f32 %v516, %v517
        %v519 = vadd.f32 %v493, %v495
        %v520 = vadd.f32 %v519, %v497
        %v521 = vadd.f32 %v520, %v499
        %v522 = vrot.slane %v521, 4
        %v523 = vadd.f32 %v521, %v522
        %v524 = vrot.slane %v523, 2
        %v525 = vadd.f32 %v523, %v524
        %v526 = vrot.slane %v525, 1
        %v527 = vadd.f32 %v525, %v526
        %v528 = vadd.f32 %v494, %v496
        %v529 = vadd.f32 %v528, %v498
        %v530 = vadd.f32 %v529, %v500
        %v531 = vrot.slane %v530, 4
        %v532 = vadd.f32 %v530, %v531
        %v533 = vrot.slane %v532, 2
        %v534 = vadd.f32 %v532, %v533
        %v535 = vrot.slane %v534, 1
        %v536 = vadd.f32 %v534, %v535
        %v537 = vmul.f32 %v527, 0.03125
        %v538 = vmul.f32 %v536, 0.03125
        %v539 = vadd.s32 %v253, 128
        %vm540 = vcmp.lt.s32.totalorder %v253, 0
        %v541 = vsub.s32 0, %v253
        %v542 = vsel %vm540, %v541, %v253
        %v543 = vshrl.u32 %v542, 4
        %v544 = vand.u32 %v542, 15
        %v545 = vsub.s32 0, %v544
        %v546 = vsel %vm540, %v545, %v544
        %vm547 = vcmp.lt.s32.totalorder %v539, 0
        %v548 = vsub.s32 0, %v539
        %v549 = vsel %vm547, %v548, %v539
        %v550 = vshrl.u32 %v549, 4
        %v551 = vand.u32 %v549, 15
        %v552 = vsub.s32 0, %v551
        %v553 = vsel %vm547, %v552, %v551
        %vm554 = vcmp.ne.s32.totalorder %v546, 0
        %vm555 = vcmp.ne.s32.totalorder %v553, 0
        %vm556 = vcmp.lt.s32.totalorder %v546, 0
        %vm557 = vcmp.lt.s32.totalorder %v553, 0
        %vm558 = vmand %vm556, %vm554
        %vm559 = vmand %vm557, %vm555
        %v560 = vadd.s32 %v546, 16
        %v561 = vadd.s32 %v553, 16
        %v562 = vsel %vm558, %v560, %v546
        %v563 = vsel %vm559, %v561, %v553
        %s564 = sld [smem:[#allocation2]]
        %s565 = sld [smem:[#allocation2 + $0x1]]
        %s566 = sld [smem:[#allocation2 + $0x2]]
        %s567 = sld [smem:[#allocation2 + $0x3]]
        %s568 = sld [smem:[#allocation2 + $0x4]]
        %s569 = sld [smem:[#allocation2 + $0x5]]
        %s570 = sld [smem:[#allocation2 + $0x6]]
        %s571 = sld [smem:[#allocation2 + $0x7]]
        %s572 = sld [smem:[#allocation2 + $0x8]]
        %s573 = sld [smem:[#allocation2 + $0x9]]
        %s574 = sld [smem:[#allocation2 + $0xa]]
        %s575 = sld [smem:[#allocation2 + $0xb]]
        %s576 = sld [smem:[#allocation2 + $0xc]]
        %s577 = sld [smem:[#allocation2 + $0xd]]
        %s578 = sld [smem:[#allocation2 + $0xe]]
        %s579 = sld [smem:[#allocation2 + $0xf]]
        %s580 = sld [smem:[#allocation2 + $0x10]]
        %s581 = sld [smem:[#allocation2 + $0x11]]
        %s582 = sld [smem:[#allocation2 + $0x12]]
        %s583 = sld [smem:[#allocation2 + $0x13]]
        %s584 = sld [smem:[#allocation2 + $0x14]]
        %s585 = sld [smem:[#allocation2 + $0x15]]
        %s586 = sld [smem:[#allocation2 + $0x16]]
        %s587 = sld [smem:[#allocation2 + $0x17]]
        %s588 = sld [smem:[#allocation2 + $0x18]]
        %s589 = sld [smem:[#allocation2 + $0x19]]
        %s590 = sld [smem:[#allocation2 + $0x1a]]
        %s591 = sld [smem:[#allocation2 + $0x1b]]
        %s592 = sld [smem:[#allocation2 + $0x1c]]
        %s593 = sld [smem:[#allocation2 + $0x1d]]
        %s594 = sld [smem:[#allocation2 + $0x1e]]
        %s595 = sld [smem:[#allocation2 + $0x1f]]
        %s596 = sld [smem:[#allocation2 + $0x20]]
        %s597 = sld [smem:[#allocation2 + $0x21]]
        %s598 = sld [smem:[#allocation2 + $0x22]]
        %s599 = sld [smem:[#allocation2 + $0x23]]
        %s600 = sld [smem:[#allocation2 + $0x24]]
        %s601 = sld [smem:[#allocation2 + $0x25]]
        %s602 = sld [smem:[#allocation2 + $0x26]]
        %s603 = sld [smem:[#allocation2 + $0x27]]
        %s604 = sld [smem:[#allocation2 + $0x28]]
        %s605 = sld [smem:[#allocation2 + $0x29]]
        %s606 = sld [smem:[#allocation2 + $0x2a]]
        %s607 = sld [smem:[#allocation2 + $0x2b]]
        %s608 = sld [smem:[#allocation2 + $0x2c]]
        %s609 = sld [smem:[#allocation2 + $0x2d]]
        %s610 = sld [smem:[#allocation2 + $0x2e]]
        %s611 = sld [smem:[#allocation2 + $0x2f]]
        %s612 = sld [smem:[#allocation2 + $0x30]]
        %s613 = sld [smem:[#allocation2 + $0x31]]
        %s614 = sld [smem:[#allocation2 + $0x32]]
        %s615 = sld [smem:[#allocation2 + $0x33]]
        %s616 = sld [smem:[#allocation2 + $0x34]]
        %s617 = sld [smem:[#allocation2 + $0x35]]
        %s618 = sld [smem:[#allocation2 + $0x36]]
        %s619 = sld [smem:[#allocation2 + $0x37]]
        %s620 = sld [smem:[#allocation2 + $0x38]]
        %s621 = sld [smem:[#allocation2 + $0x39]]
        %s622 = sld [smem:[#allocation2 + $0x3a]]
        %s623 = sld [smem:[#allocation2 + $0x3b]]
        %s624 = sld [smem:[#allocation2 + $0x3c]]
        %s625 = sld [smem:[#allocation2 + $0x3d]]
        %s626 = sld [smem:[#allocation2 + $0x3e]]
        %s627 = sld [smem:[#allocation2 + $0x3f]]
        %s628 = sld [smem:[#allocation2 + $0x40]]
        %s629 = sld [smem:[#allocation2 + $0x41]]
        %s630 = sld [smem:[#allocation2 + $0x42]]
        %s631 = sld [smem:[#allocation2 + $0x43]]
        %s632 = sld [smem:[#allocation2 + $0x44]]
        %s633 = sld [smem:[#allocation2 + $0x45]]
        %s634 = sld [smem:[#allocation2 + $0x46]]
        %s635 = sld [smem:[#allocation2 + $0x47]]
        %s636 = sld [smem:[#allocation2 + $0x48]]
        %s637 = sld [smem:[#allocation2 + $0x49]]
        %s638 = sld [smem:[#allocation2 + $0x4a]]
        %s639 = sld [smem:[#allocation2 + $0x4b]]
        %s640 = sld [smem:[#allocation2 + $0x4c]]
        %s641 = sld [smem:[#allocation2 + $0x4d]]
        %s642 = sld [smem:[#allocation2 + $0x4e]]
        %s643 = sld [smem:[#allocation2 + $0x4f]]
        %s644 = sld [smem:[#allocation2 + $0x50]]
        %s645 = sld [smem:[#allocation2 + $0x51]]
        %s646 = sld [smem:[#allocation2 + $0x52]]
        %s647 = sld [smem:[#allocation2 + $0x53]]
        %s648 = sld [smem:[#allocation2 + $0x54]]
        %s649 = sld [smem:[#allocation2 + $0x55]]
        %s650 = sld [smem:[#allocation2 + $0x56]]
        %s651 = sld [smem:[#allocation2 + $0x57]]
        %s652 = sld [smem:[#allocation2 + $0x58]]
        %s653 = sld [smem:[#allocation2 + $0x59]]
        %s654 = sld [smem:[#allocation2 + $0x5a]]
        %s655 = sld [smem:[#allocation2 + $0x5b]]
        %s656 = sld [smem:[#allocation2 + $0x5c]]
        %s657 = sld [smem:[#allocation2 + $0x5d]]
        %s658 = sld [smem:[#allocation2 + $0x5e]]
        %s659 = sld [smem:[#allocation2 + $0x5f]]
        %s660 = sld [smem:[#allocation2 + $0x60]]
        %s661 = sld [smem:[#allocation2 + $0x61]]
        %662 = vrot.lane.b32.xlu0 %v537, 3
        %v663 = vpop.permute.xlu0 %662
        %664 = vrot.lane.b32.xlu0 %v538, 3
        %v665 = vpop.permute.xlu0 %664
        %vm666 = vcmp.lt.s32.totalorder %v253, 3
        %v667 = vsel %vm666, %v663, %v665
        %v668 = vsel %vm666, %v665, %v663
        %669 = vrot.lane.b32.xlu0 %v509, 3
        %v670 = vpop.permute.xlu0 %669
        %671 = vrot.lane.b32.xlu0 %v518, 3
        %v672 = vpop.permute.xlu0 %671
        %v673 = vsel %vm666, %v670, %v672
        %v674 = vsel %vm666, %v672, %v670
        %vm675 = vcmp.ge.s32.totalorder %v562, 3
        %vm676 = vcmp.ge.s32.totalorder %v563, 3
        %v677 = vsel %vm675, %v668, 0.0
        %v678 = vsel %vm676, %v667, 0.0
        %v679 = vsel %vm675, %v674, 0.0
        %v680 = vsel %vm676, %v673, 0.0
        %v681 = vstv %s564
        %v682 = vmul.f32 %v681, %v677
        %v683 = vmul.f32 %v681, %v678
        %v684 = vstv %s613
        %v685 = vmul.f32 %v684, %v679
        %v686 = vmul.f32 %v684, %v680
        %v687 = vadd.f32 %v682, %v685
        %v688 = vadd.f32 %v683, %v686
        %689 = vrot.lane.b32.xlu0 %v687, 48
        %v690 = vpop.permute.xlu0 %689
        %691 = vrot.lane.b32.xlu0 %v688, 48
        %v692 = vpop.permute.xlu0 %691
        %vm693 = vcmp.lt.s32.totalorder %v253, 48
        %v694 = vsel %vm693, %v690, %v692
        %v695 = vsel %vm693, %v692, %v690
        %vm696 = vcmp.ge.s32.totalorder %v253, 48
        %vm697 = vcmp.ge.s32.totalorder %v539, 48
        %v698 = vsel %vm696, %v695, 0.0
        %v699 = vsel %vm697, %v694, 0.0
        %v700 = vadd.f32 %v698, 0.0
        %v701 = vadd.f32 %v699, 0.0
        %v702 = vstv %s571
        %v703 = vmul.f32 %v702, %v677
        %v704 = vmul.f32 %v702, %v678
        %v705 = vstv %s620
        %v706 = vmul.f32 %v705, %v679
        %v707 = vmul.f32 %v705, %v680
        %v708 = vadd.f32 %v703, %v706
        %v709 = vadd.f32 %v704, %v707
        %710 = vrot.lane.b32.xlu0 %v708, 32
        %v711 = vpop.permute.xlu0 %710
        %712 = vrot.lane.b32.xlu0 %v709, 32
        %v713 = vpop.permute.xlu0 %712
        %vm714 = vcmp.lt.s32.totalorder %v253, 32
        %v715 = vsel %vm714, %v711, %v713
        %v716 = vsel %vm714, %v713, %v711
        %vm717 = vcmp.ge.s32.totalorder %v253, 32
        %vm718 = vcmp.ge.s32.totalorder %v539, 32
        %v719 = vsel %vm717, %v716, 0.0
        %v720 = vsel %vm718, %v715, 0.0
        %v721 = vadd.f32 %v700, %v719
        %v722 = vadd.f32 %v701, %v720
        %v723 = vstv %s578
        %v724 = vmul.f32 %v723, %v677
        %v725 = vmul.f32 %v723, %v678
        %v726 = vstv %s627
        %v727 = vmul.f32 %v726, %v679
        %v728 = vmul.f32 %v726, %v680
        %v729 = vadd.f32 %v724, %v727
        %v730 = vadd.f32 %v725, %v728
        %731 = vrot.lane.b32.xlu0 %v729, 16
        %v732 = vpop.permute.xlu0 %731
        %733 = vrot.lane.b32.xlu0 %v730, 16
        %v734 = vpop.permute.xlu0 %733
        %vm735 = vcmp.lt.s32.totalorder %v253, 16
        %v736 = vsel %vm735, %v732, %v734
        %v737 = vsel %vm735, %v734, %v732
        %vm738 = vcmp.ge.s32.totalorder %v253, 16
        %vm739 = vcmp.ge.s32.totalorder %v539, 16
        %v740 = vsel %vm738, %v737, 0.0
        %v741 = vsel %vm739, %v736, 0.0
        %v742 = vadd.f32 %v721, %v740
        %v743 = vadd.f32 %v722, %v741
        %v744 = vstv %s585
        %v745 = vmul.f32 %v744, %v677
        %v746 = vmul.f32 %v744, %v678
        %v747 = vstv %s634
        %v748 = vmul.f32 %v747, %v679
        %v749 = vmul.f32 %v747, %v680
        %v750 = vadd.f32 %v745, %v748
        %v751 = vadd.f32 %v746, %v749
        %v752 = vadd.f32 %v742, %v750
        %v753 = vadd.f32 %v743, %v751
        %v754 = vstv %s592
        %v755 = vmul.f32 %v754, %v677
        %v756 = vmul.f32 %v754, %v678
        %v757 = vstv %s641
        %v758 = vmul.f32 %v757, %v679
        %v759 = vmul.f32 %v757, %v680
        %v760 = vadd.f32 %v755, %v758
        %v761 = vadd.f32 %v756, %v759
        %762 = vrot.lane.b32.xlu0 %v760, 112
        %v763 = vpop.permute.xlu0 %762
        %764 = vrot.lane.b32.xlu0 %v761, 112
        %v765 = vpop.permute.xlu0 %764
        %vm766 = vcmp.lt.s32.totalorder %v253, 112
        %v767 = vsel %vm766, %v763, %v765
        %v768 = vsel %vm766, %v765, %v763
        %vm769 = vcmp.lt.s32.totalorder %v253, 240
        %vm770 = vcmp.lt.s32.totalorder %v539, 240
        %v771 = vsel %vm769, %v767, 0.0
        %v772 = vsel %vm770, %v768, 0.0
        %v773 = vadd.f32 %v752, %v771
        %v774 = vadd.f32 %v753, %v772
        %v775 = vstv %s599
        %v776 = vmul.f32 %v775, %v677
        %v777 = vmul.f32 %v775, %v678
        %v778 = vstv %s648
        %v779 = vmul.f32 %v778, %v679
        %v780 = vmul.f32 %v778, %v680
        %v781 = vadd.f32 %v776, %v779
        %v782 = vadd.f32 %v777, %v780
        %783 = vrot.lane.b32.xlu0 %v781, 96
        %v784 = vpop.permute.xlu0 %783
        %785 = vrot.lane.b32.xlu0 %v782, 96
        %v786 = vpop.permute.xlu0 %785
        %vm787 = vcmp.lt.s32.totalorder %v253, 96
        %v788 = vsel %vm787, %v784, %v786
        %v789 = vsel %vm787, %v786, %v784
        %vm790 = vcmp.lt.s32.totalorder %v253, 224
        %vm791 = vcmp.lt.s32.totalorder %v539, 224
        %v792 = vsel %vm790, %v788, 0.0
        %v793 = vsel %vm791, %v789, 0.0
        %v794 = vadd.f32 %v773, %v792
        %v795 = vadd.f32 %v774, %v793
        %v796 = vstv %s606
        %v797 = vmul.f32 %v796, %v677
        %v798 = vmul.f32 %v796, %v678
        %v799 = vstv %s655
        %v800 = vmul.f32 %v799, %v679
        %v801 = vmul.f32 %v799, %v680
        %v802 = vadd.f32 %v797, %v800
        %v803 = vadd.f32 %v798, %v801
        %804 = vrot.lane.b32.xlu0 %v802, 80
        %v805 = vpop.permute.xlu0 %804
        %806 = vrot.lane.b32.xlu0 %v803, 80
        %v807 = vpop.permute.xlu0 %806
        %vm808 = vcmp.lt.s32.totalorder %v253, 80
        %v809 = vsel %vm808, %v805, %v807
        %v810 = vsel %vm808, %v807, %v805
        %vm811 = vcmp.lt.s32.totalorder %v253, 208
        %vm812 = vcmp.lt.s32.totalorder %v539, 208
        %v813 = vsel %vm811, %v809, 0.0
        %v814 = vsel %vm812, %v810, 0.0
        %v815 = vadd.f32 %v794, %v813
        %v816 = vadd.f32 %v795, %v814
        %817 = vrot.lane.b32.xlu0 %v537, 2
        %v818 = vpop.permute.xlu0 %817
        %819 = vrot.lane.b32.xlu0 %v538, 2
        %v820 = vpop.permute.xlu0 %819
        %vm821 = vcmp.lt.s32.totalorder %v253, 2
        %v822 = vsel %vm821, %v818, %v820
        %v823 = vsel %vm821, %v820, %v818
        %824 = vrot.lane.b32.xlu0 %v509, 2
        %v825 = vpop.permute.xlu0 %824
        %826 = vrot.lane.b32.xlu0 %v518, 2
        %v827 = vpop.permute.xlu0 %826
        %v828 = vsel %vm821, %v825, %v827
        %v829 = vsel %vm821, %v827, %v825
        %vm830 = vcmp.ge.s32.totalorder %v562, 2
        %vm831 = vcmp.ge.s32.totalorder %v563, 2
        %v832 = vsel %vm830, %v823, 0.0
        %v833 = vsel %vm831, %v822, 0.0
        %v834 = vsel %vm830, %v829, 0.0
        %v835 = vsel %vm831, %v828, 0.0
        %v836 = vstv %s565
        %v837 = vmul.f32 %v836, %v832
        %v838 = vmul.f32 %v836, %v833
        %v839 = vstv %s614
        %v840 = vmul.f32 %v839, %v834
        %v841 = vmul.f32 %v839, %v835
        %v842 = vadd.f32 %v837, %v840
        %v843 = vadd.f32 %v838, %v841
        %844 = vrot.lane.b32.xlu0 %v842, 48
        %v845 = vpop.permute.xlu0 %844
        %846 = vrot.lane.b32.xlu0 %v843, 48
        %v847 = vpop.permute.xlu0 %846
        %v848 = vsel %vm693, %v845, %v847
        %v849 = vsel %vm693, %v847, %v845
        %v850 = vsel %vm696, %v849, 0.0
        %v851 = vsel %vm697, %v848, 0.0
        %v852 = vadd.f32 %v815, %v850
        %v853 = vadd.f32 %v816, %v851
        %v854 = vstv %s572
        %v855 = vmul.f32 %v854, %v832
        %v856 = vmul.f32 %v854, %v833
        %v857 = vstv %s621
        %v858 = vmul.f32 %v857, %v834
        %v859 = vmul.f32 %v857, %v835
        %v860 = vadd.f32 %v855, %v858
        %v861 = vadd.f32 %v856, %v859
        %862 = vrot.lane.b32.xlu0 %v860, 32
        %v863 = vpop.permute.xlu0 %862
        %864 = vrot.lane.b32.xlu0 %v861, 32
        %v865 = vpop.permute.xlu0 %864
        %v866 = vsel %vm714, %v863, %v865
        %v867 = vsel %vm714, %v865, %v863
        %v868 = vsel %vm717, %v867, 0.0
        %v869 = vsel %vm718, %v866, 0.0
        %v870 = vadd.f32 %v852, %v868
        %v871 = vadd.f32 %v853, %v869
        %v872 = vstv %s579
        %v873 = vmul.f32 %v872, %v832
        %v874 = vmul.f32 %v872, %v833
        %v875 = vstv %s628
        %v876 = vmul.f32 %v875, %v834
        %v877 = vmul.f32 %v875, %v835
        %v878 = vadd.f32 %v873, %v876
        %v879 = vadd.f32 %v874, %v877
        %880 = vrot.lane.b32.xlu0 %v878, 16
        %v881 = vpop.permute.xlu0 %880
        %882 = vrot.lane.b32.xlu0 %v879, 16
        %v883 = vpop.permute.xlu0 %882
        %v884 = vsel %vm735, %v881, %v883
        %v885 = vsel %vm735, %v883, %v881
        %v886 = vsel %vm738, %v885, 0.0
        %v887 = vsel %vm739, %v884, 0.0
        %v888 = vadd.f32 %v870, %v886
        %v889 = vadd.f32 %v871, %v887
        %v890 = vstv %s586
        %v891 = vmul.f32 %v890, %v832
        %v892 = vmul.f32 %v890, %v833
        %v893 = vstv %s635
        %v894 = vmul.f32 %v893, %v834
        %v895 = vmul.f32 %v893, %v835
        %v896 = vadd.f32 %v891, %v894
        %v897 = vadd.f32 %v892, %v895
        %v898 = vadd.f32 %v888, %v896
        %v899 = vadd.f32 %v889, %v897
        %v900 = vstv %s593
        %v901 = vmul.f32 %v900, %v832
        %v902 = vmul.f32 %v900, %v833
        %v903 = vstv %s642
        %v904 = vmul.f32 %v903, %v834
        %v905 = vmul.f32 %v903, %v835
        %v906 = vadd.f32 %v901, %v904
        %v907 = vadd.f32 %v902, %v905
        %908 = vrot.lane.b32.xlu0 %v906, 112
        %v909 = vpop.permute.xlu0 %908
        %910 = vrot.lane.b32.xlu0 %v907, 112
        %v911 = vpop.permute.xlu0 %910
        %v912 = vsel %vm766, %v909, %v911
        %v913 = vsel %vm766, %v911, %v909
        %v914 = vsel %vm769, %v912, 0.0
        %v915 = vsel %vm770, %v913, 0.0
        %v916 = vadd.f32 %v898, %v914
        %v917 = vadd.f32 %v899, %v915
        %v918 = vstv %s600
        %v919 = vmul.f32 %v918, %v832
        %v920 = vmul.f32 %v918, %v833
        %v921 = vstv %s649
        %v922 = vmul.f32 %v921, %v834
        %v923 = vmul.f32 %v921, %v835
        %v924 = vadd.f32 %v919, %v922
        %v925 = vadd.f32 %v920, %v923
        %926 = vrot.lane.b32.xlu0 %v924, 96
        %v927 = vpop.permute.xlu0 %926
        %928 = vrot.lane.b32.xlu0 %v925, 96
        %v929 = vpop.permute.xlu0 %928
        %v930 = vsel %vm787, %v927, %v929
        %v931 = vsel %vm787, %v929, %v927
        %v932 = vsel %vm790, %v930, 0.0
        %v933 = vsel %vm791, %v931, 0.0
        %v934 = vadd.f32 %v916, %v932
        %v935 = vadd.f32 %v917, %v933
        %v936 = vstv %s607
        %v937 = vmul.f32 %v936, %v832
        %v938 = vmul.f32 %v936, %v833
        %v939 = vstv %s656
        %v940 = vmul.f32 %v939, %v834
        %v941 = vmul.f32 %v939, %v835
        %v942 = vadd.f32 %v937, %v940
        %v943 = vadd.f32 %v938, %v941
        %944 = vrot.lane.b32.xlu0 %v942, 80
        %v945 = vpop.permute.xlu0 %944
        %946 = vrot.lane.b32.xlu0 %v943, 80
        %v947 = vpop.permute.xlu0 %946
        %v948 = vsel %vm808, %v945, %v947
        %v949 = vsel %vm808, %v947, %v945
        %v950 = vsel %vm811, %v948, 0.0
        %v951 = vsel %vm812, %v949, 0.0
        %v952 = vadd.f32 %v934, %v950
        %v953 = vadd.f32 %v935, %v951
        %954 = vrot.lane.b32.xlu0 %v537, 1
        %v955 = vpop.permute.xlu0 %954
        %956 = vrot.lane.b32.xlu0 %v538, 1
        %v957 = vpop.permute.xlu0 %956
        %vm958 = vcmp.lt.s32.totalorder %v253, 1
        %v959 = vsel %vm958, %v955, %v957
        %v960 = vsel %vm958, %v957, %v955
        %961 = vrot.lane.b32.xlu0 %v509, 1
        %v962 = vpop.permute.xlu0 %961
        %963 = vrot.lane.b32.xlu0 %v518, 1
        %v964 = vpop.permute.xlu0 %963
        %v965 = vsel %vm958, %v962, %v964
        %v966 = vsel %vm958, %v964, %v962
        %vm967 = vcmp.ge.s32.totalorder %v562, 1
        %vm968 = vcmp.ge.s32.totalorder %v563, 1
        %v969 = vsel %vm967, %v960, 0.0
        %v970 = vsel %vm968, %v959, 0.0
        %v971 = vsel %vm967, %v966, 0.0
        %v972 = vsel %vm968, %v965, 0.0
        %v973 = vstv %s566
        %v974 = vmul.f32 %v973, %v969
        %v975 = vmul.f32 %v973, %v970
        %v976 = vstv %s615
        %v977 = vmul.f32 %v976, %v971
        %v978 = vmul.f32 %v976, %v972
        %v979 = vadd.f32 %v974, %v977
        %v980 = vadd.f32 %v975, %v978
        %981 = vrot.lane.b32.xlu0 %v979, 48
        %v982 = vpop.permute.xlu0 %981
        %983 = vrot.lane.b32.xlu0 %v980, 48
        %v984 = vpop.permute.xlu0 %983
        %v985 = vsel %vm693, %v982, %v984
        %v986 = vsel %vm693, %v984, %v982
        %v987 = vsel %vm696, %v986, 0.0
        %v988 = vsel %vm697, %v985, 0.0
        %v989 = vadd.f32 %v952, %v987
        %v990 = vadd.f32 %v953, %v988
        %v991 = vstv %s573
        %v992 = vmul.f32 %v991, %v969
        %v993 = vmul.f32 %v991, %v970
        %v994 = vstv %s622
        %v995 = vmul.f32 %v994, %v971
        %v996 = vmul.f32 %v994, %v972
        %v997 = vadd.f32 %v992, %v995
        %v998 = vadd.f32 %v993, %v996
        %999 = vrot.lane.b32.xlu0 %v997, 32
        %v1000 = vpop.permute.xlu0 %999
        %1001 = vrot.lane.b32.xlu0 %v998, 32
        %v1002 = vpop.permute.xlu0 %1001
        %v1003 = vsel %vm714, %v1000, %v1002
        %v1004 = vsel %vm714, %v1002, %v1000
        %v1005 = vsel %vm717, %v1004, 0.0
        %v1006 = vsel %vm718, %v1003, 0.0
        %v1007 = vadd.f32 %v989, %v1005
        %v1008 = vadd.f32 %v990, %v1006
        %v1009 = vstv %s580
        %v1010 = vmul.f32 %v1009, %v969
        %v1011 = vmul.f32 %v1009, %v970
        %v1012 = vstv %s629
        %v1013 = vmul.f32 %v1012, %v971
        %v1014 = vmul.f32 %v1012, %v972
        %v1015 = vadd.f32 %v1010, %v1013
        %v1016 = vadd.f32 %v1011, %v1014
        %1017 = vrot.lane.b32.xlu0 %v1015, 16
        %v1018 = vpop.permute.xlu0 %1017
        %1019 = vrot.lane.b32.xlu0 %v1016, 16
        %v1020 = vpop.permute.xlu0 %1019
        %v1021 = vsel %vm735, %v1018, %v1020
        %v1022 = vsel %vm735, %v1020, %v1018
        %v1023 = vsel %vm738, %v1022, 0.0
        %v1024 = vsel %vm739, %v1021, 0.0
        %v1025 = vadd.f32 %v1007, %v1023
        %v1026 = vadd.f32 %v1008, %v1024
        %v1027 = vstv %s587
        %v1028 = vmul.f32 %v1027, %v969
        %v1029 = vmul.f32 %v1027, %v970
        %v1030 = vstv %s636
        %v1031 = vmul.f32 %v1030, %v971
        %v1032 = vmul.f32 %v1030, %v972
        %v1033 = vadd.f32 %v1028, %v1031
        %v1034 = vadd.f32 %v1029, %v1032
        %v1035 = vadd.f32 %v1025, %v1033
        %v1036 = vadd.f32 %v1026, %v1034
        %v1037 = vstv %s594
        %v1038 = vmul.f32 %v1037, %v969
        %v1039 = vmul.f32 %v1037, %v970
        %v1040 = vstv %s643
        %v1041 = vmul.f32 %v1040, %v971
        %v1042 = vmul.f32 %v1040, %v972
        %v1043 = vadd.f32 %v1038, %v1041
        %v1044 = vadd.f32 %v1039, %v1042
        %1045 = vrot.lane.b32.xlu0 %v1043, 112
        %v1046 = vpop.permute.xlu0 %1045
        %1047 = vrot.lane.b32.xlu0 %v1044, 112
        %v1048 = vpop.permute.xlu0 %1047
        %v1049 = vsel %vm766, %v1046, %v1048
        %v1050 = vsel %vm766, %v1048, %v1046
        %v1051 = vsel %vm769, %v1049, 0.0
        %v1052 = vsel %vm770, %v1050, 0.0
        %v1053 = vadd.f32 %v1035, %v1051
        %v1054 = vadd.f32 %v1036, %v1052
        %v1055 = vstv %s601
        %v1056 = vmul.f32 %v1055, %v969
        %v1057 = vmul.f32 %v1055, %v970
        %v1058 = vstv %s650
        %v1059 = vmul.f32 %v1058, %v971
        %v1060 = vmul.f32 %v1058, %v972
        %v1061 = vadd.f32 %v1056, %v1059
        %v1062 = vadd.f32 %v1057, %v1060
        %1063 = vrot.lane.b32.xlu0 %v1061, 96
        %v1064 = vpop.permute.xlu0 %1063
        %1065 = vrot.lane.b32.xlu0 %v1062, 96
        %v1066 = vpop.permute.xlu0 %1065
        %v1067 = vsel %vm787, %v1064, %v1066
        %v1068 = vsel %vm787, %v1066, %v1064
        %v1069 = vsel %vm790, %v1067, 0.0
        %v1070 = vsel %vm791, %v1068, 0.0
        %v1071 = vadd.f32 %v1053, %v1069
        %v1072 = vadd.f32 %v1054, %v1070
        %v1073 = vstv %s608
        %v1074 = vmul.f32 %v1073, %v969
        %v1075 = vmul.f32 %v1073, %v970
        %v1076 = vstv %s657
        %v1077 = vmul.f32 %v1076, %v971
        %v1078 = vmul.f32 %v1076, %v972
        %v1079 = vadd.f32 %v1074, %v1077
        %v1080 = vadd.f32 %v1075, %v1078
        %1081 = vrot.lane.b32.xlu0 %v1079, 80
        %v1082 = vpop.permute.xlu0 %1081
        %1083 = vrot.lane.b32.xlu0 %v1080, 80
        %v1084 = vpop.permute.xlu0 %1083
        %v1085 = vsel %vm808, %v1082, %v1084
        %v1086 = vsel %vm808, %v1084, %v1082
        %v1087 = vsel %vm811, %v1085, 0.0
        %v1088 = vsel %vm812, %v1086, 0.0
        %v1089 = vadd.f32 %v1071, %v1087
        %v1090 = vadd.f32 %v1072, %v1088
        %v1091 = vstv %s567
        %v1092 = vmul.f32 %v1091, %v537
        %v1093 = vmul.f32 %v1091, %v538
        %v1094 = vstv %s616
        %v1095 = vmul.f32 %v1094, %v509
        %v1096 = vmul.f32 %v1094, %v518
        %v1097 = vadd.f32 %v1092, %v1095
        %v1098 = vadd.f32 %v1093, %v1096
        %1099 = vrot.lane.b32.xlu0 %v1097, 48
        %v1100 = vpop.permute.xlu0 %1099
        %1101 = vrot.lane.b32.xlu0 %v1098, 48
        %v1102 = vpop.permute.xlu0 %1101
        %v1103 = vsel %vm693, %v1100, %v1102
        %v1104 = vsel %vm693, %v1102, %v1100
        %v1105 = vsel %vm696, %v1104, 0.0
        %v1106 = vsel %vm697, %v1103, 0.0
        %v1107 = vadd.f32 %v1089, %v1105
        %v1108 = vadd.f32 %v1090, %v1106
        %v1109 = vstv %s574
        %v1110 = vmul.f32 %v1109, %v537
        %v1111 = vmul.f32 %v1109, %v538
        %v1112 = vstv %s623
        %v1113 = vmul.f32 %v1112, %v509
        %v1114 = vmul.f32 %v1112, %v518
        %v1115 = vadd.f32 %v1110, %v1113
        %v1116 = vadd.f32 %v1111, %v1114
        %1117 = vrot.lane.b32.xlu0 %v1115, 32
        %v1118 = vpop.permute.xlu0 %1117
        %1119 = vrot.lane.b32.xlu0 %v1116, 32
        %v1120 = vpop.permute.xlu0 %1119
        %v1121 = vsel %vm714, %v1118, %v1120
        %v1122 = vsel %vm714, %v1120, %v1118
        %v1123 = vsel %vm717, %v1122, 0.0
        %v1124 = vsel %vm718, %v1121, 0.0
        %v1125 = vadd.f32 %v1107, %v1123
        %v1126 = vadd.f32 %v1108, %v1124
        %v1127 = vstv %s581
        %v1128 = vmul.f32 %v1127, %v537
        %v1129 = vmul.f32 %v1127, %v538
        %v1130 = vstv %s630
        %v1131 = vmul.f32 %v1130, %v509
        %v1132 = vmul.f32 %v1130, %v518
        %v1133 = vadd.f32 %v1128, %v1131
        %v1134 = vadd.f32 %v1129, %v1132
        %1135 = vrot.lane.b32.xlu0 %v1133, 16
        %v1136 = vpop.permute.xlu0 %1135
        %1137 = vrot.lane.b32.xlu0 %v1134, 16
        %v1138 = vpop.permute.xlu0 %1137
        %v1139 = vsel %vm735, %v1136, %v1138
        %v1140 = vsel %vm735, %v1138, %v1136
        %v1141 = vsel %vm738, %v1140, 0.0
        %v1142 = vsel %vm739, %v1139, 0.0
        %v1143 = vadd.f32 %v1125, %v1141
        %v1144 = vadd.f32 %v1126, %v1142
        %v1145 = vstv %s588
        %v1146 = vmul.f32 %v1145, %v537
        %v1147 = vmul.f32 %v1145, %v538
        %v1148 = vstv %s637
        %v1149 = vmul.f32 %v1148, %v509
        %v1150 = vmul.f32 %v1148, %v518
        %v1151 = vadd.f32 %v1146, %v1149
        %v1152 = vadd.f32 %v1147, %v1150
        %v1153 = vadd.f32 %v1143, %v1151
        %v1154 = vadd.f32 %v1144, %v1152
        %v1155 = vstv %s595
        %v1156 = vmul.f32 %v1155, %v537
        %v1157 = vmul.f32 %v1155, %v538
        %v1158 = vstv %s644
        %v1159 = vmul.f32 %v1158, %v509
        %v1160 = vmul.f32 %v1158, %v518
        %v1161 = vadd.f32 %v1156, %v1159
        %v1162 = vadd.f32 %v1157, %v1160
        %1163 = vrot.lane.b32.xlu0 %v1161, 112
        %v1164 = vpop.permute.xlu0 %1163
        %1165 = vrot.lane.b32.xlu0 %v1162, 112
        %v1166 = vpop.permute.xlu0 %1165
        %v1167 = vsel %vm766, %v1164, %v1166
        %v1168 = vsel %vm766, %v1166, %v1164
        %v1169 = vsel %vm769, %v1167, 0.0
        %v1170 = vsel %vm770, %v1168, 0.0
        %v1171 = vadd.f32 %v1153, %v1169
        %v1172 = vadd.f32 %v1154, %v1170
        %v1173 = vstv %s602
        %v1174 = vmul.f32 %v1173, %v537
        %v1175 = vmul.f32 %v1173, %v538
        %v1176 = vstv %s651
        %v1177 = vmul.f32 %v1176, %v509
        %v1178 = vmul.f32 %v1176, %v518
        %v1179 = vadd.f32 %v1174, %v1177
        %v1180 = vadd.f32 %v1175, %v1178
        %1181 = vrot.lane.b32.xlu0 %v1179, 96
        %v1182 = vpop.permute.xlu0 %1181
        %1183 = vrot.lane.b32.xlu0 %v1180, 96
        %v1184 = vpop.permute.xlu0 %1183
        %v1185 = vsel %vm787, %v1182, %v1184
        %v1186 = vsel %vm787, %v1184, %v1182
        %v1187 = vsel %vm790, %v1185, 0.0
        %v1188 = vsel %vm791, %v1186, 0.0
        %v1189 = vadd.f32 %v1171, %v1187
        %v1190 = vadd.f32 %v1172, %v1188
        %v1191 = vstv %s609
        %v1192 = vmul.f32 %v1191, %v537
        %v1193 = vmul.f32 %v1191, %v538
        %v1194 = vstv %s658
        %v1195 = vmul.f32 %v1194, %v509
        %v1196 = vmul.f32 %v1194, %v518
        %v1197 = vadd.f32 %v1192, %v1195
        %v1198 = vadd.f32 %v1193, %v1196
        %1199 = vrot.lane.b32.xlu0 %v1197, 80
        %v1200 = vpop.permute.xlu0 %1199
        %1201 = vrot.lane.b32.xlu0 %v1198, 80
        %v1202 = vpop.permute.xlu0 %1201
        %v1203 = vsel %vm808, %v1200, %v1202
        %v1204 = vsel %vm808, %v1202, %v1200
        %v1205 = vsel %vm811, %v1203, 0.0
        %v1206 = vsel %vm812, %v1204, 0.0
        %v1207 = vadd.f32 %v1189, %v1205
        %v1208 = vadd.f32 %v1190, %v1206
        %1209 = vrot.lane.b32.xlu0 %v537, 127
        %v1210 = vpop.permute.xlu0 %1209
        %1211 = vrot.lane.b32.xlu0 %v538, 127
        %v1212 = vpop.permute.xlu0 %1211
        %vm1213 = vcmp.lt.s32.totalorder %v253, 127
        %v1214 = vsel %vm1213, %v1210, %v1212
        %v1215 = vsel %vm1213, %v1212, %v1210
        %1216 = vrot.lane.b32.xlu0 %v509, 127
        %v1217 = vpop.permute.xlu0 %1216
        %1218 = vrot.lane.b32.xlu0 %v518, 127
        %v1219 = vpop.permute.xlu0 %1218
        %v1220 = vsel %vm1213, %v1217, %v1219
        %v1221 = vsel %vm1213, %v1219, %v1217
        %vm1222 = vcmp.lt.s32.totalorder %v562, 15
        %vm1223 = vcmp.lt.s32.totalorder %v563, 15
        %v1224 = vsel %vm1222, %v1214, 0.0
        %v1225 = vsel %vm1223, %v1215, 0.0
        %v1226 = vsel %vm1222, %v1220, 0.0
        %v1227 = vsel %vm1223, %v1221, 0.0
        %v1228 = vstv %s568
        %v1229 = vmul.f32 %v1228, %v1224
        %v1230 = vmul.f32 %v1228, %v1225
        %v1231 = vstv %s617
        %v1232 = vmul.f32 %v1231, %v1226
        %v1233 = vmul.f32 %v1231, %v1227
        %v1234 = vadd.f32 %v1229, %v1232
        %v1235 = vadd.f32 %v1230, %v1233
        %1236 = vrot.lane.b32.xlu0 %v1234, 48
        %v1237 = vpop.permute.xlu0 %1236
        %1238 = vrot.lane.b32.xlu0 %v1235, 48
        %v1239 = vpop.permute.xlu0 %1238
        %v1240 = vsel %vm693, %v1237, %v1239
        %v1241 = vsel %vm693, %v1239, %v1237
        %v1242 = vsel %vm696, %v1241, 0.0
        %v1243 = vsel %vm697, %v1240, 0.0
        %v1244 = vadd.f32 %v1207, %v1242
        %v1245 = vadd.f32 %v1208, %v1243
        %v1246 = vstv %s575
        %v1247 = vmul.f32 %v1246, %v1224
        %v1248 = vmul.f32 %v1246, %v1225
        %v1249 = vstv %s624
        %v1250 = vmul.f32 %v1249, %v1226
        %v1251 = vmul.f32 %v1249, %v1227
        %v1252 = vadd.f32 %v1247, %v1250
        %v1253 = vadd.f32 %v1248, %v1251
        %1254 = vrot.lane.b32.xlu0 %v1252, 32
        %v1255 = vpop.permute.xlu0 %1254
        %1256 = vrot.lane.b32.xlu0 %v1253, 32
        %v1257 = vpop.permute.xlu0 %1256
        %v1258 = vsel %vm714, %v1255, %v1257
        %v1259 = vsel %vm714, %v1257, %v1255
        %v1260 = vsel %vm717, %v1259, 0.0
        %v1261 = vsel %vm718, %v1258, 0.0
        %v1262 = vadd.f32 %v1244, %v1260
        %v1263 = vadd.f32 %v1245, %v1261
        %v1264 = vstv %s582
        %v1265 = vmul.f32 %v1264, %v1224
        %v1266 = vmul.f32 %v1264, %v1225
        %v1267 = vstv %s631
        %v1268 = vmul.f32 %v1267, %v1226
        %v1269 = vmul.f32 %v1267, %v1227
        %v1270 = vadd.f32 %v1265, %v1268
        %v1271 = vadd.f32 %v1266, %v1269
        %1272 = vrot.lane.b32.xlu0 %v1270, 16
        %v1273 = vpop.permute.xlu0 %1272
        %1274 = vrot.lane.b32.xlu0 %v1271, 16
        %v1275 = vpop.permute.xlu0 %1274
        %v1276 = vsel %vm735, %v1273, %v1275
        %v1277 = vsel %vm735, %v1275, %v1273
        %v1278 = vsel %vm738, %v1277, 0.0
        %v1279 = vsel %vm739, %v1276, 0.0
        %v1280 = vadd.f32 %v1262, %v1278
        %v1281 = vadd.f32 %v1263, %v1279
        %v1282 = vstv %s589
        %v1283 = vmul.f32 %v1282, %v1224
        %v1284 = vmul.f32 %v1282, %v1225
        %v1285 = vstv %s638
        %v1286 = vmul.f32 %v1285, %v1226
        %v1287 = vmul.f32 %v1285, %v1227
        %v1288 = vadd.f32 %v1283, %v1286
        %v1289 = vadd.f32 %v1284, %v1287
        %v1290 = vadd.f32 %v1280, %v1288
        %v1291 = vadd.f32 %v1281, %v1289
        %v1292 = vstv %s596
        %v1293 = vmul.f32 %v1292, %v1224
        %v1294 = vmul.f32 %v1292, %v1225
        %v1295 = vstv %s645
        %v1296 = vmul.f32 %v1295, %v1226
        %v1297 = vmul.f32 %v1295, %v1227
        %v1298 = vadd.f32 %v1293, %v1296
        %v1299 = vadd.f32 %v1294, %v1297
        %1300 = vrot.lane.b32.xlu0 %v1298, 112
        %v1301 = vpop.permute.xlu0 %1300
        %1302 = vrot.lane.b32.xlu0 %v1299, 112
        %v1303 = vpop.permute.xlu0 %1302
        %v1304 = vsel %vm766, %v1301, %v1303
        %v1305 = vsel %vm766, %v1303, %v1301
        %v1306 = vsel %vm769, %v1304, 0.0
        %v1307 = vsel %vm770, %v1305, 0.0
        %v1308 = vadd.f32 %v1290, %v1306
        %v1309 = vadd.f32 %v1291, %v1307
        %v1310 = vstv %s603
        %v1311 = vmul.f32 %v1310, %v1224
        %v1312 = vmul.f32 %v1310, %v1225
        %v1313 = vstv %s652
        %v1314 = vmul.f32 %v1313, %v1226
        %v1315 = vmul.f32 %v1313, %v1227
        %v1316 = vadd.f32 %v1311, %v1314
        %v1317 = vadd.f32 %v1312, %v1315
        %1318 = vrot.lane.b32.xlu0 %v1316, 96
        %v1319 = vpop.permute.xlu0 %1318
        %1320 = vrot.lane.b32.xlu0 %v1317, 96
        %v1321 = vpop.permute.xlu0 %1320
        %v1322 = vsel %vm787, %v1319, %v1321
        %v1323 = vsel %vm787, %v1321, %v1319
        %v1324 = vsel %vm790, %v1322, 0.0
        %v1325 = vsel %vm791, %v1323, 0.0
        %v1326 = vadd.f32 %v1308, %v1324
        %v1327 = vadd.f32 %v1309, %v1325
        %v1328 = vstv %s610
        %v1329 = vmul.f32 %v1328, %v1224
        %v1330 = vmul.f32 %v1328, %v1225
        %v1331 = vstv %s659
        %v1332 = vmul.f32 %v1331, %v1226
        %v1333 = vmul.f32 %v1331, %v1227
        %v1334 = vadd.f32 %v1329, %v1332
        %v1335 = vadd.f32 %v1330, %v1333
        %1336 = vrot.lane.b32.xlu0 %v1334, 80
        %v1337 = vpop.permute.xlu0 %1336
        %1338 = vrot.lane.b32.xlu0 %v1335, 80
        %v1339 = vpop.permute.xlu0 %1338
        %v1340 = vsel %vm808, %v1337, %v1339
        %v1341 = vsel %vm808, %v1339, %v1337
        %v1342 = vsel %vm811, %v1340, 0.0
        %v1343 = vsel %vm812, %v1341, 0.0
        %v1344 = vadd.f32 %v1326, %v1342
        %v1345 = vadd.f32 %v1327, %v1343
        %1346 = vrot.lane.b32.xlu0 %v537, 126
        %v1347 = vpop.permute.xlu0 %1346
        %1348 = vrot.lane.b32.xlu0 %v538, 126
        %v1349 = vpop.permute.xlu0 %1348
        %vm1350 = vcmp.lt.s32.totalorder %v253, 126
        %v1351 = vsel %vm1350, %v1347, %v1349
        %v1352 = vsel %vm1350, %v1349, %v1347
        %1353 = vrot.lane.b32.xlu0 %v509, 126
        %v1354 = vpop.permute.xlu0 %1353
        %1355 = vrot.lane.b32.xlu0 %v518, 126
        %v1356 = vpop.permute.xlu0 %1355
        %v1357 = vsel %vm1350, %v1354, %v1356
        %v1358 = vsel %vm1350, %v1356, %v1354
        %vm1359 = vcmp.lt.s32.totalorder %v562, 14
        %vm1360 = vcmp.lt.s32.totalorder %v563, 14
        %v1361 = vsel %vm1359, %v1351, 0.0
        %v1362 = vsel %vm1360, %v1352, 0.0
        %v1363 = vsel %vm1359, %v1357, 0.0
        %v1364 = vsel %vm1360, %v1358, 0.0
        %v1365 = vstv %s569
        %v1366 = vmul.f32 %v1365, %v1361
        %v1367 = vmul.f32 %v1365, %v1362
        %v1368 = vstv %s618
        %v1369 = vmul.f32 %v1368, %v1363
        %v1370 = vmul.f32 %v1368, %v1364
        %v1371 = vadd.f32 %v1366, %v1369
        %v1372 = vadd.f32 %v1367, %v1370
        %1373 = vrot.lane.b32.xlu0 %v1371, 48
        %v1374 = vpop.permute.xlu0 %1373
        %1375 = vrot.lane.b32.xlu0 %v1372, 48
        %v1376 = vpop.permute.xlu0 %1375
        %v1377 = vsel %vm693, %v1374, %v1376
        %v1378 = vsel %vm693, %v1376, %v1374
        %v1379 = vsel %vm696, %v1378, 0.0
        %v1380 = vsel %vm697, %v1377, 0.0
        %v1381 = vadd.f32 %v1344, %v1379
        %v1382 = vadd.f32 %v1345, %v1380
        %v1383 = vstv %s576
        %v1384 = vmul.f32 %v1383, %v1361
        %v1385 = vmul.f32 %v1383, %v1362
        %v1386 = vstv %s625
        %v1387 = vmul.f32 %v1386, %v1363
        %v1388 = vmul.f32 %v1386, %v1364
        %v1389 = vadd.f32 %v1384, %v1387
        %v1390 = vadd.f32 %v1385, %v1388
        %1391 = vrot.lane.b32.xlu0 %v1389, 32
        %v1392 = vpop.permute.xlu0 %1391
        %1393 = vrot.lane.b32.xlu0 %v1390, 32
        %v1394 = vpop.permute.xlu0 %1393
        %v1395 = vsel %vm714, %v1392, %v1394
        %v1396 = vsel %vm714, %v1394, %v1392
        %v1397 = vsel %vm717, %v1396, 0.0
        %v1398 = vsel %vm718, %v1395, 0.0
        %v1399 = vadd.f32 %v1381, %v1397
        %v1400 = vadd.f32 %v1382, %v1398
        %v1401 = vstv %s583
        %v1402 = vmul.f32 %v1401, %v1361
        %v1403 = vmul.f32 %v1401, %v1362
        %v1404 = vstv %s632
        %v1405 = vmul.f32 %v1404, %v1363
        %v1406 = vmul.f32 %v1404, %v1364
        %v1407 = vadd.f32 %v1402, %v1405
        %v1408 = vadd.f32 %v1403, %v1406
        %1409 = vrot.lane.b32.xlu0 %v1407, 16
        %v1410 = vpop.permute.xlu0 %1409
        %1411 = vrot.lane.b32.xlu0 %v1408, 16
        %v1412 = vpop.permute.xlu0 %1411
        %v1413 = vsel %vm735, %v1410, %v1412
        %v1414 = vsel %vm735, %v1412, %v1410
        %v1415 = vsel %vm738, %v1414, 0.0
        %v1416 = vsel %vm739, %v1413, 0.0
        %v1417 = vadd.f32 %v1399, %v1415
        %v1418 = vadd.f32 %v1400, %v1416
        %v1419 = vstv %s590
        %v1420 = vmul.f32 %v1419, %v1361
        %v1421 = vmul.f32 %v1419, %v1362
        %v1422 = vstv %s639
        %v1423 = vmul.f32 %v1422, %v1363
        %v1424 = vmul.f32 %v1422, %v1364
        %v1425 = vadd.f32 %v1420, %v1423
        %v1426 = vadd.f32 %v1421, %v1424
        %v1427 = vadd.f32 %v1417, %v1425
        %v1428 = vadd.f32 %v1418, %v1426
        %v1429 = vstv %s597
        %v1430 = vmul.f32 %v1429, %v1361
        %v1431 = vmul.f32 %v1429, %v1362
        %v1432 = vstv %s646
        %v1433 = vmul.f32 %v1432, %v1363
        %v1434 = vmul.f32 %v1432, %v1364
        %v1435 = vadd.f32 %v1430, %v1433
        %v1436 = vadd.f32 %v1431, %v1434
        %1437 = vrot.lane.b32.xlu0 %v1435, 112
        %v1438 = vpop.permute.xlu0 %1437
        %1439 = vrot.lane.b32.xlu0 %v1436, 112
        %v1440 = vpop.permute.xlu0 %1439
        %v1441 = vsel %vm766, %v1438, %v1440
        %v1442 = vsel %vm766, %v1440, %v1438
        %v1443 = vsel %vm769, %v1441, 0.0
        %v1444 = vsel %vm770, %v1442, 0.0
        %v1445 = vadd.f32 %v1427, %v1443
        %v1446 = vadd.f32 %v1428, %v1444
        %v1447 = vstv %s604
        %v1448 = vmul.f32 %v1447, %v1361
        %v1449 = vmul.f32 %v1447, %v1362
        %v1450 = vstv %s653
        %v1451 = vmul.f32 %v1450, %v1363
        %v1452 = vmul.f32 %v1450, %v1364
        %v1453 = vadd.f32 %v1448, %v1451
        %v1454 = vadd.f32 %v1449, %v1452
        %1455 = vrot.lane.b32.xlu0 %v1453, 96
        %v1456 = vpop.permute.xlu0 %1455
        %1457 = vrot.lane.b32.xlu0 %v1454, 96
        %v1458 = vpop.permute.xlu0 %1457
        %v1459 = vsel %vm787, %v1456, %v1458
        %v1460 = vsel %vm787, %v1458, %v1456
        %v1461 = vsel %vm790, %v1459, 0.0
        %v1462 = vsel %vm791, %v1460, 0.0
        %v1463 = vadd.f32 %v1445, %v1461
        %v1464 = vadd.f32 %v1446, %v1462
        %v1465 = vstv %s611
        %v1466 = vmul.f32 %v1465, %v1361
        %v1467 = vmul.f32 %v1465, %v1362
        %v1468 = vstv %s660
        %v1469 = vmul.f32 %v1468, %v1363
        %v1470 = vmul.f32 %v1468, %v1364
        %v1471 = vadd.f32 %v1466, %v1469
        %v1472 = vadd.f32 %v1467, %v1470
        %1473 = vrot.lane.b32.xlu0 %v1471, 80
        %v1474 = vpop.permute.xlu0 %1473
        %1475 = vrot.lane.b32.xlu0 %v1472, 80
        %v1476 = vpop.permute.xlu0 %1475
        %v1477 = vsel %vm808, %v1474, %v1476
        %v1478 = vsel %vm808, %v1476, %v1474
        %v1479 = vsel %vm811, %v1477, 0.0
        %v1480 = vsel %vm812, %v1478, 0.0
        %v1481 = vadd.f32 %v1463, %v1479
        %v1482 = vadd.f32 %v1464, %v1480
        %1483 = vrot.lane.b32.xlu0 %v537, 125
        %v1484 = vpop.permute.xlu0 %1483
        %1485 = vrot.lane.b32.xlu0 %v538, 125
        %v1486 = vpop.permute.xlu0 %1485
        %vm1487 = vcmp.lt.s32.totalorder %v253, 125
        %v1488 = vsel %vm1487, %v1484, %v1486
        %v1489 = vsel %vm1487, %v1486, %v1484
        %1490 = vrot.lane.b32.xlu0 %v509, 125
        %v1491 = vpop.permute.xlu0 %1490
        %1492 = vrot.lane.b32.xlu0 %v518, 125
        %v1493 = vpop.permute.xlu0 %1492
        %v1494 = vsel %vm1487, %v1491, %v1493
        %v1495 = vsel %vm1487, %v1493, %v1491
        %vm1496 = vcmp.lt.s32.totalorder %v562, 13
        %vm1497 = vcmp.lt.s32.totalorder %v563, 13
        %v1498 = vsel %vm1496, %v1488, 0.0
        %v1499 = vsel %vm1497, %v1489, 0.0
        %v1500 = vsel %vm1496, %v1494, 0.0
        %v1501 = vsel %vm1497, %v1495, 0.0
        %v1502 = vstv %s570
        %v1503 = vmul.f32 %v1502, %v1498
        %v1504 = vmul.f32 %v1502, %v1499
        %v1505 = vstv %s619
        %v1506 = vmul.f32 %v1505, %v1500
        %v1507 = vmul.f32 %v1505, %v1501
        %v1508 = vadd.f32 %v1503, %v1506
        %v1509 = vadd.f32 %v1504, %v1507
        %1510 = vrot.lane.b32.xlu0 %v1508, 48
        %v1511 = vpop.permute.xlu0 %1510
        %1512 = vrot.lane.b32.xlu0 %v1509, 48
        %v1513 = vpop.permute.xlu0 %1512
        %v1514 = vsel %vm693, %v1511, %v1513
        %v1515 = vsel %vm693, %v1513, %v1511
        %v1516 = vsel %vm696, %v1515, 0.0
        %v1517 = vsel %vm697, %v1514, 0.0
        %v1518 = vadd.f32 %v1481, %v1516
        %v1519 = vadd.f32 %v1482, %v1517
        %v1520 = vstv %s577
        %v1521 = vmul.f32 %v1520, %v1498
        %v1522 = vmul.f32 %v1520, %v1499
        %v1523 = vstv %s626
        %v1524 = vmul.f32 %v1523, %v1500
        %v1525 = vmul.f32 %v1523, %v1501
        %v1526 = vadd.f32 %v1521, %v1524
        %v1527 = vadd.f32 %v1522, %v1525
        %1528 = vrot.lane.b32.xlu0 %v1526, 32
        %v1529 = vpop.permute.xlu0 %1528
        %1530 = vrot.lane.b32.xlu0 %v1527, 32
        %v1531 = vpop.permute.xlu0 %1530
        %v1532 = vsel %vm714, %v1529, %v1531
        %v1533 = vsel %vm714, %v1531, %v1529
        %v1534 = vsel %vm717, %v1533, 0.0
        %v1535 = vsel %vm718, %v1532, 0.0
        %v1536 = vadd.f32 %v1518, %v1534
        %v1537 = vadd.f32 %v1519, %v1535
        %v1538 = vstv %s584
        %v1539 = vmul.f32 %v1538, %v1498
        %v1540 = vmul.f32 %v1538, %v1499
        %v1541 = vstv %s633
        %v1542 = vmul.f32 %v1541, %v1500
        %v1543 = vmul.f32 %v1541, %v1501
        %v1544 = vadd.f32 %v1539, %v1542
        %v1545 = vadd.f32 %v1540, %v1543
        %1546 = vrot.lane.b32.xlu0 %v1544, 16
        %v1547 = vpop.permute.xlu0 %1546
        %1548 = vrot.lane.b32.xlu0 %v1545, 16
        %v1549 = vpop.permute.xlu0 %1548
        %v1550 = vsel %vm735, %v1547, %v1549
        %v1551 = vsel %vm735, %v1549, %v1547
        %v1552 = vsel %vm738, %v1551, 0.0
        %v1553 = vsel %vm739, %v1550, 0.0
        %v1554 = vadd.f32 %v1536, %v1552
        %v1555 = vadd.f32 %v1537, %v1553
        %v1556 = vstv %s591
        %v1557 = vmul.f32 %v1556, %v1498
        %v1558 = vmul.f32 %v1556, %v1499
        %v1559 = vstv %s640
        %v1560 = vmul.f32 %v1559, %v1500
        %v1561 = vmul.f32 %v1559, %v1501
        %v1562 = vadd.f32 %v1557, %v1560
        %v1563 = vadd.f32 %v1558, %v1561
        %v1564 = vadd.f32 %v1554, %v1562
        %v1565 = vadd.f32 %v1555, %v1563
        %v1566 = vstv %s598
        %v1567 = vmul.f32 %v1566, %v1498
        %v1568 = vmul.f32 %v1566, %v1499
        %v1569 = vstv %s647
        %v1570 = vmul.f32 %v1569, %v1500
        %v1571 = vmul.f32 %v1569, %v1501
        %v1572 = vadd.f32 %v1567, %v1570
        %v1573 = vadd.f32 %v1568, %v1571
        %1574 = vrot.lane.b32.xlu0 %v1572, 112
        %v1575 = vpop.permute.xlu0 %1574
        %1576 = vrot.lane.b32.xlu0 %v1573, 112
        %v1577 = vpop.permute.xlu0 %1576
        %v1578 = vsel %vm766, %v1575, %v1577
        %v1579 = vsel %vm766, %v1577, %v1575
        %v1580 = vsel %vm769, %v1578, 0.0
        %v1581 = vsel %vm770, %v1579, 0.0
        %v1582 = vadd.f32 %v1564, %v1580
        %v1583 = vadd.f32 %v1565, %v1581
        %v1584 = vstv %s605
        %v1585 = vmul.f32 %v1584, %v1498
        %v1586 = vmul.f32 %v1584, %v1499
        %v1587 = vstv %s654
        %v1588 = vmul.f32 %v1587, %v1500
        %v1589 = vmul.f32 %v1587, %v1501
        %v1590 = vadd.f32 %v1585, %v1588
        %v1591 = vadd.f32 %v1586, %v1589
        %1592 = vrot.lane.b32.xlu0 %v1590, 96
        %v1593 = vpop.permute.xlu0 %1592
        %1594 = vrot.lane.b32.xlu0 %v1591, 96
        %v1595 = vpop.permute.xlu0 %1594
        %v1596 = vsel %vm787, %v1593, %v1595
        %v1597 = vsel %vm787, %v1595, %v1593
        %v1598 = vsel %vm790, %v1596, 0.0
        %v1599 = vsel %vm791, %v1597, 0.0
        %v1600 = vadd.f32 %v1582, %v1598
        %v1601 = vadd.f32 %v1583, %v1599
        %v1602 = vstv %s612
        %v1603 = vmul.f32 %v1602, %v1498
        %v1604 = vmul.f32 %v1602, %v1499
        %v1605 = vstv %s661
        %v1606 = vmul.f32 %v1605, %v1500
        %v1607 = vmul.f32 %v1605, %v1501
        %v1608 = vadd.f32 %v1603, %v1606
        %v1609 = vadd.f32 %v1604, %v1607
        %1610 = vrot.lane.b32.xlu0 %v1608, 80
        %v1611 = vpop.permute.xlu0 %1610
        %1612 = vrot.lane.b32.xlu0 %v1609, 80
        %v1613 = vpop.permute.xlu0 %1612
        %v1614 = vsel %vm808, %v1611, %v1613
        %v1615 = vsel %vm808, %v1613, %v1611
        %v1616 = vsel %vm811, %v1614, 0.0
        %v1617 = vsel %vm812, %v1615, 0.0
        %v1618 = vadd.f32 %v1600, %v1616
        %v1619 = vadd.f32 %v1601, %v1617
        %v1620 = vxor.u32 %v1618, 2147483648
        %v1621 = vxor.u32 %v1619, 2147483648
        %v1622 = vmul.f32 %v1620, 1.442695
        %v1623 = vpow.pop %v1622
        %v1624 = vmul.f32 %v1621, 1.442695
        %v1625 = vpow.pop %v1624
        %v1626 = vadd.f32 %v1623, 1.0
        %v1627 = vadd.f32 %v1625, 1.0
        %v1628 = vrcp.pop %v1626
        %v1629 = vmul.f32 1.0, %v1628
        %v1630 = vrcp.pop %v1627
        %v1631 = vmul.f32 1.0, %v1630
        %v1632 = vlaneseq
        %v1633 = vshrl.u32 %v1632, 7
        %v1634 = vsub.s32 0, %v1633
        %v1635 = vrot.slane %v1629, %v1634
        %v1636 = vlaneseq
        %v1637 = vshrl.u32 %v1636, 7
        %v1638 = vsub.s32 0, %v1637
        %v1639 = vrot.slane %v1631, %v1638
        %v1640 = vmul.f32 %v493, %v1635
        %v1641 = vmul.f32 %v494, %v1639
        %v1642 = vmul.f32 %v495, %v1635
        %v1643 = vmul.f32 %v496, %v1639
        %v1644 = vmul.f32 %v497, %v1635
        %v1645 = vmul.f32 %v498, %v1639
        %v1646 = vmul.f32 %v499, %v1635
        %v1647 = vmul.f32 %v500, %v1639
        %1648 = vst [vmem:[%s211] sm:$0xff] %v1640
        %1649 = vst [vmem:[%s211 + $0x8] sm:$0xff] %v1641
        %1650 = vst [vmem:[%s211 + $0x10] sm:$0xff] %v1642
        %1651 = vst [vmem:[%s211 + $0x18] sm:$0xff] %v1643
        %1652 = vst [vmem:[%s211 + $0x20] sm:$0xff] %v1644
        %1653 = vst [vmem:[%s211 + $0x28] sm:$0xff] %v1645
        %1654 = vst [vmem:[%s211 + $0x30] sm:$0xff] %v1646
        %1655 = vst [vmem:[%s211 + $0x38] sm:$0xff] %v1647
        %p1656 = scmp.lt.s32.totalorder %s16, 1
        %s1657 = scalar_select %p1656, %s16, 1
        %s1658 = smul.addr %s1657, 8
        %s1659 = smul.addr %s1658, 8
        %s1660 = scalar_lea.vmem %s4, %s1659
        // Predicated region
        $region41: #{cbam_pallas.1} parent=35 // pred_check
          %p1661 = pneg %p123
        $region42: #{cbam_pallas.1} parent=35 // pred_check_branch
          %1663 = sbr.rel (%p1661) target = $region44
        $region43: #{cbam_pallas.1} parent=35 // pred_region
          _
        $region44: #{cbam_pallas.1} parent=35 // pred_fallthru
          _
      $region36: #{cbam_pallas.1} parent=5 // pred_fallthru
        _
      %p1664 = scmp.le.s32.totalorder 2, %s11
      // Predicated region
      $region45: #{cbam_pallas.1} parent=5 // pred_check
        %p1665 = pneg %p1664
      $region46: #{cbam_pallas.1} parent=5 // pred_check_branch
        %1667 = sbr.rel (%p1665) target = $region48
      $region47: #{cbam_pallas.1} parent=5 // pred_region
        %s1668 = ssub.s32 %s11, 2
        // Predicated region
        $region49: #{cbam_pallas.1} parent=47 // pred_check
          %p1669 = pneg %p129
        $region50: #{cbam_pallas.1} parent=47 // pred_check_branch
          %1671 = sbr.rel (%p1669) target = $region52
        $region51: #{cbam_pallas.1} parent=47 // pred_region
          %p1672 = scmp.lt.s32.totalorder %s17, 1
          %s1673 = scalar_select %p1672, %s17, 1
          %s1674 = smul.addr %s1673, 8
          %s1675 = smul.addr %s1674, 8
          %s1676 = scalar_lea.vmem %s4, %s1675
        $region52: #{cbam_pallas.1} parent=47 // pred_fallthru
          _
      $region48: #{cbam_pallas.1} parent=5 // pred_fallthru
        _
    $region6: #{cbam_pallas.1} parent=1 // loop_footer
      %s15 = sadd.s32 1, %s11
    $region7: #{cbam_pallas.1} parent=1 // loop_footer_branch
      %10 = sbr.rel target = $region3
    $region8: #{cbam_pallas.1} parent=1 // loop_exit
      _
    %1677 = vsyncpa [#allocation3], 1
    %s1678 = scalar_lea.sflag [#allocation3], 1
    %1679 = vsyncpa %s1678, 1

</llo_original>
